<compile_context>
chip_gen: v5e
topology: v5e:2x2
jax: 0.10.0
libtpu: 0.0.40
codegen_flags: <defaults>
</compile_context>

<pallas_src>
import functools

import jax
import jax.numpy as jnp
from jax.experimental import pallas as pl
from jax.experimental.pallas import tpu as pltpu


def kwinners_kernel(x_ref, duty_ref, out_ref, cnt_ref, *, k, boost_strength):
    """One batch tile: boost, exact k-th-largest threshold per row, keep top-k.

    x_ref:    (TB, N) f32   input activations (flattened C*H*W on lanes)
    duty_ref: (1,  N) f32   per-unit duty cycle (channel value broadcast over H*W)
    out_ref:  (TB, N) f32   k-winner output
    cnt_ref:  (8,  N) f32   per-unit winner counts of this tile (row 0), rows 1..7 zero
    """
    x = x_ref[...]                          # (TB, N)
    duty = duty_ref[...]                    # (1,  N)
    tb, n = x.shape

    target_density = float(k) / float(n)
    # boostStrength == 0 reduces to boost == 1 (same as the un-boosted branch).
    boost = jnp.exp((target_density - duty) * boost_strength)      # (1, N)  EUP
    boosted = x * boost                                             # (TB, N)

    # ---- exact k-th largest per row via bitwise radix select -------------------
    # Map f32 -> order-preserving signed int32 key:
    #   positive floats: key = bits ; negative floats: key = bits ^ 0x7FFFFFFF
    bits = pltpu.bitcast(boosted, jnp.int32)
    key = jnp.where(bits >= 0, bits, bits ^ jnp.int32(0x7FFFFFFF))  # (TB, N) i32

    # MSB-first binary search in the biased-unsigned space u = key ^ 0x80000000:
    # find the largest threshold T with count(key >= T) >= k  (== k-th largest key).
    sign_flip = jnp.int32(-(2 ** 31))
    kf = float(k)
    prefix_u = jnp.zeros((tb, 1), dtype=jnp.int32)
    for bit in range(31, -1, -1):
        mask = -(2 ** 31) if bit == 31 else (1 << bit)
        cand_u = prefix_u | jnp.int32(mask)            # (TB, 1)
        cand_s = cand_u ^ sign_flip                    # back to signed-key space
        ge = (key >= cand_s).astype(jnp.float32)       # (TB, N)
        cnt = jnp.sum(ge, axis=-1, keepdims=True)      # (TB, 1) lane reduction
        prefix_u = jnp.where(cnt >= kf, cand_u, prefix_u)
    thresh = prefix_u ^ sign_flip                      # (TB, 1) signed key of k-th largest

    keep = key >= thresh                               # (TB, N) bool
    out = jnp.where(keep, x, jnp.zeros_like(x))
    out_ref[...] = out

    # ---- fused duty-cycle statistic: per-unit winner count for this tile -------
    winners = jnp.where(out > 0.0, 1.0, 0.0)                       # (TB, N)
    cnt_row = jnp.sum(winners, axis=0, keepdims=True)              # (1, N)
    row_ids = jax.lax.broadcasted_iota(jnp.int32, (8, n), 0)       # (8, N)
    cnt_ref[...] = jnp.where(row_ids == 0,
                             jnp.broadcast_to(cnt_row, (8, n)), 0.0)


def _pick_batch_tile(b, n, target_tile_bytes=4 * 1024 * 1024):
    """Largest batch tile (multiple of 8, divides b) with tile <= ~4 MiB (v7x-safe)."""
    if b <= 8:
        return b
    max_rows = max(8, target_tile_bytes // (n * 4))
    for cand in (512, 256, 128, 64, 32, 16, 8):
        if cand <= max_rows and b % cand == 0:
            return cand
    return b  # b not a multiple of 8: whole batch in one tile


def kwinners2d_forward(x, duty_cycle, k, boost_strength):
    """KWinners2d forward (training-mode k).

    x:          (B, C, H, W) f32
    duty_cycle: (1, C, 1, 1) f32  (per-channel duty cycle buffer)
    Returns (out (B,C,H,W), winner_counts (N,)) with N = C*H*W; winner_counts[j]
    is the number of batch samples for which flattened unit j was a positive winner
    (feeds updateDutyCycle without re-reading `out` from HBM).
    """
    b, c, h, w = x.shape
    n = c * h * w
    x2 = x.reshape(b, n)
    duty_flat = jnp.broadcast_to(
        duty_cycle.reshape(c, 1).astype(jnp.float32), (c, h * w)
    ).reshape(1, n)

    tb = _pick_batch_tile(b, n)
    grid_steps = b // tb

    tile_bytes = tb * n * 4
    vmem_limit = int(max(32 * 2 ** 20, min(100 * 2 ** 20, 5 * tile_bytes + 64 * n * 4)))

    kernel = functools.partial(kwinners_kernel, k=int(k),
                               boost_strength=float(boost_strength))
    out2, counts = pl.pallas_call(
        kernel,
        out_shape=(
            jax.ShapeDtypeStruct((b, n), x.dtype),
            jax.ShapeDtypeStruct((grid_steps * 8, n), jnp.float32),
        ),
        grid=(grid_steps,),
        in_specs=[
            pl.BlockSpec((tb, n), lambda i: (i, 0)),   # x tile (pipelined over batch)
            pl.BlockSpec((1, n), lambda i: (0, 0)),    # duty cycle, stays resident
        ],
        out_specs=(
            pl.BlockSpec((tb, n), lambda i: (i, 0)),   # output tile
            pl.BlockSpec((8, n), lambda i: (i, 0)),    # per-tile winner counts (row 0)
        ),
        compiler_params=pltpu.CompilerParams(
            dimension_semantics=("parallel",),
            vmem_limit_bytes=vmem_limit,
        ),
    )(x2, duty_flat)

    winner_counts = jnp.sum(counts, axis=0)            # (N,) rows 1..7 of each tile are 0
    return out2.reshape(b, c, h, w), winner_counts


def update_duty_cycle_2d(duty_cycle, winner_counts, batch_size, h, w,
                         learning_iterations, duty_cycle_period):
    """KWinners2d.updateDutyCycle, driven by the kernel's fused winner counts."""
    c = duty_cycle.shape[1]
    learning_iterations = learning_iterations + batch_size
    period = min(duty_cycle_period, learning_iterations)
    scale = float(h * w)
    s = winner_counts.reshape(c, h * w).sum(axis=-1) / scale        # per-channel
    new_duty = (duty_cycle.reshape(-1) * (period - batch_size) + s) / period
    return new_duty.reshape(1, c, 1, 1), learning_iterations


if __name__ == "__main__":
    # Module config (training mode, k = self.k).
    B, C, H, W = 2, 4, 16, 16
    n = C * H * W            # 1024 (lane-dense: multiple of 128)
    k = 32
    boost_strength = 1.0
    duty_cycle_period = 1000

    key = jax.random.PRNGKey(0)
    x = jax.random.normal(key, (B, C, H, W), dtype=jnp.float32)
    duty_cycle = jnp.zeros((1, C, 1, 1), dtype=jnp.float32)   # register_buffer('dutyCycle', ...)

    out, winner_counts = kwinners2d_forward(x, duty_cycle, k, boost_strength)
    out = jax.block_until_ready(out)
    winner_counts = jax.block_until_ready(winner_counts)

    # Reference (pure JAX, lax.top_k over the flattened boosted activations).
    boost = jnp.exp((k / n - duty_cycle) * boost_strength)          # (1,C,1,1)
    boosted = (x * boost).reshape(B, n)
    thresh = jax.lax.top_k(boosted, k)[0][:, -1:]
    ref = jnp.where(boosted >= thresh, x.reshape(B, n), 0.0).reshape(B, C, H, W)
    assert jnp.allclose(out, ref, atol=1e-6), "mismatch vs reference"
    # Exactly k winners per sample holds for continuous random inputs (no ties).
    assert int(jnp.sum(out != 0)) == B * k, "wrong number of winners"

    # Fused winner counts must match counts recomputed from the output.
    ref_counts = jnp.sum((out.reshape(B, n) > 0).astype(jnp.float32), axis=0)
    assert jnp.allclose(winner_counts, ref_counts), "fused duty-cycle counts mismatch"

    # Training-mode side effect (buffer update), done in plain JAX on the fused counts.
    duty_cycle, learning_iterations = update_duty_cycle_2d(
        duty_cycle, winner_counts, B, H, W, 0, duty_cycle_period)
    jax.block_until_ready(duty_cycle)

    print("KERNEL_OK")
</pallas_src>

<mosaic_0001>
module attributes {stable_mosaic.version = 11 : i64} {
  func.func @kwinners_kernel(%arg0: i32, %arg1: memref<2x1024xf32, #tpu.memory_space<vmem>>, %arg2: memref<1x1024xf32, #tpu.memory_space<vmem>>, %arg3: memref<2x1024xf32, #tpu.memory_space<vmem>>, %arg4: memref<8x1024xf32, #tpu.memory_space<vmem>>) attributes {dimension_semantics = [#tpu.dimension_semantics<parallel>], iteration_bounds = array<i64: 1>, scalar_prefetch = 0 : i64, scratch_operands = 0 : i64, tpu.core_type = #tpu.core_type<tc>, window_params = [{transform_indices = @transform_0, window_bounds = array<i64: 2, 1024>}, {pipeline_mode = #tpu.pipeline_mode<synchronous>, transform_indices = @transform_1, window_bounds = array<i64: 1, 1024>}, {transform_indices = @transform_2, window_bounds = array<i64: 2, 1024>}, {transform_indices = @transform_3, window_bounds = array<i64: 8, 1024>}]} {
    %c0 = arith.constant 0 : index
    %c0_0 = arith.constant 0 : index
    %0 = vector.load %arg1[%c0, %c0_0] : memref<2x1024xf32, #tpu.memory_space<vmem>>, vector<2x1024xf32>
    %c0_1 = arith.constant 0 : index
    %c0_2 = arith.constant 0 : index
    %1 = vector.load %arg2[%c0_1, %c0_2] : memref<1x1024xf32, #tpu.memory_space<vmem>>, vector<1x1024xf32>
    %cst = arith.constant 3.125000e-02 : f32
    %2 = vector.broadcast %cst : f32 to vector<1x1024xf32>
    %3 = arith.subf %2, %1 : vector<1x1024xf32>
    %cst_3 = arith.constant 1.000000e+00 : f32
    %4 = vector.broadcast %cst_3 : f32 to vector<1x1024xf32>
    %5 = arith.mulf %3, %4 : vector<1x1024xf32>
    %6 = math.exp %5 : vector<1x1024xf32>
    %7 = vector.broadcast %6 : vector<1x1024xf32> to vector<2x1024xf32>
    %8 = arith.mulf %0, %7 : vector<2x1024xf32>
    %9 = tpu.bitcast %8 : vector<2x1024xf32> -> vector<2x1024xi32>
    %c0_i32 = arith.constant 0 : i32
    %10 = vector.broadcast %c0_i32 : i32 to vector<2x1024xi32>
    %11 = arith.cmpi sge, %9, %10 : vector<2x1024xi32>
    %c2147483647_i32 = arith.constant 2147483647 : i32
    %12 = vector.broadcast %c2147483647_i32 : i32 to vector<2x1024xi32>
    %13 = arith.xori %9, %12 : vector<2x1024xi32>
    %14 = arith.select %11, %9, %13 : vector<2x1024xi1>, vector<2x1024xi32>
    %c0_i32_4 = arith.constant 0 : i32
    %15 = vector.broadcast %c0_i32_4 : i32 to vector<2x1xi32>
    %c-2147483648_i32 = arith.constant -2147483648 : i32
    %16 = vector.broadcast %c-2147483648_i32 : i32 to vector<2x1xi32>
    %17 = arith.ori %15, %16 : vector<2x1xi32>
    %c-2147483648_i32_5 = arith.constant -2147483648 : i32
    %18 = vector.broadcast %c-2147483648_i32_5 : i32 to vector<2x1xi32>
    %19 = arith.xori %17, %18 : vector<2x1xi32>
    %20 = vector.broadcast %19 : vector<2x1xi32> to vector<2x1024xi32>
    %21 = arith.cmpi sge, %14, %20 : vector<2x1024xi32>
    %22 = arith.extui %21 : vector<2x1024xi1> to vector<2x1024xi32>
    %23 = arith.sitofp %22 : vector<2x1024xi32> to vector<2x1024xf32>
    %cst_6 = arith.constant dense<0.000000e+00> : vector<2xf32>
    %24 = vector.multi_reduction <add>, %23, %cst_6 [1] : vector<2x1024xf32> to vector<2xf32>
    %25 = vector.shape_cast %24 : vector<2xf32> to vector<2x1xf32>
    %cst_7 = arith.constant 3.200000e+01 : f32
    %26 = vector.broadcast %cst_7 : f32 to vector<2x1xf32>
    %27 = arith.cmpf oge, %25, %26 : vector<2x1xf32>
    %28 = arith.select %27, %17, %15 : vector<2x1xi1>, vector<2x1xi32>
    %c1073741824_i32 = arith.constant 1073741824 : i32
    %29 = vector.broadcast %c1073741824_i32 : i32 to vector<2x1xi32>
    %30 = arith.ori %28, %29 : vector<2x1xi32>
    %c-2147483648_i32_8 = arith.constant -2147483648 : i32
    %31 = vector.broadcast %c-2147483648_i32_8 : i32 to vector<2x1xi32>
    %32 = arith.xori %30, %31 : vector<2x1xi32>
    %33 = vector.broadcast %32 : vector<2x1xi32> to vector<2x1024xi32>
    %34 = arith.cmpi sge, %14, %33 : vector<2x1024xi32>
    %35 = arith.extui %34 : vector<2x1024xi1> to vector<2x1024xi32>
    %36 = arith.sitofp %35 : vector<2x1024xi32> to vector<2x1024xf32>
    %cst_9 = arith.constant dense<0.000000e+00> : vector<2xf32>
    %37 = vector.multi_reduction <add>, %36, %cst_9 [1] : vector<2x1024xf32> to vector<2xf32>
    %38 = vector.shape_cast %37 : vector<2xf32> to vector<2x1xf32>
    %cst_10 = arith.constant 3.200000e+01 : f32
    %39 = vector.broadcast %cst_10 : f32 to vector<2x1xf32>
    %40 = arith.cmpf oge, %38, %39 : vector<2x1xf32>
    %41 = arith.select %40, %30, %28 : vector<2x1xi1>, vector<2x1xi32>
    %c536870912_i32 = arith.constant 536870912 : i32
    %42 = vector.broadcast %c536870912_i32 : i32 to vector<2x1xi32>
    %43 = arith.ori %41, %42 : vector<2x1xi32>
    %c-2147483648_i32_11 = arith.constant -2147483648 : i32
    %44 = vector.broadcast %c-2147483648_i32_11 : i32 to vector<2x1xi32>
    %45 = arith.xori %43, %44 : vector<2x1xi32>
    %46 = vector.broadcast %45 : vector<2x1xi32> to vector<2x1024xi32>
    %47 = arith.cmpi sge, %14, %46 : vector<2x1024xi32>
    %48 = arith.extui %47 : vector<2x1024xi1> to vector<2x1024xi32>
    %49 = arith.sitofp %48 : vector<2x1024xi32> to vector<2x1024xf32>
    %cst_12 = arith.constant dense<0.000000e+00> : vector<2xf32>
    %50 = vector.multi_reduction <add>, %49, %cst_12 [1] : vector<2x1024xf32> to vector<2xf32>
    %51 = vector.shape_cast %50 : vector<2xf32> to vector<2x1xf32>
    %cst_13 = arith.constant 3.200000e+01 : f32
    %52 = vector.broadcast %cst_13 : f32 to vector<2x1xf32>
    %53 = arith.cmpf oge, %51, %52 : vector<2x1xf32>
    %54 = arith.select %53, %43, %41 : vector<2x1xi1>, vector<2x1xi32>
    %c268435456_i32 = arith.constant 268435456 : i32
    %55 = vector.broadcast %c268435456_i32 : i32 to vector<2x1xi32>
    %56 = arith.ori %54, %55 : vector<2x1xi32>
    %c-2147483648_i32_14 = arith.constant -2147483648 : i32
    %57 = vector.broadcast %c-2147483648_i32_14 : i32 to vector<2x1xi32>
    %58 = arith.xori %56, %57 : vector<2x1xi32>
    %59 = vector.broadcast %58 : vector<2x1xi32> to vector<2x1024xi32>
    %60 = arith.cmpi sge, %14, %59 : vector<2x1024xi32>
    %61 = arith.extui %60 : vector<2x1024xi1> to vector<2x1024xi32>
    %62 = arith.sitofp %61 : vector<2x1024xi32> to vector<2x1024xf32>
    %cst_15 = arith.constant dense<0.000000e+00> : vector<2xf32>
    %63 = vector.multi_reduction <add>, %62, %cst_15 [1] : vector<2x1024xf32> to vector<2xf32>
    %64 = vector.shape_cast %63 : vector<2xf32> to vector<2x1xf32>
    %cst_16 = arith.constant 3.200000e+01 : f32
    %65 = vector.broadcast %cst_16 : f32 to vector<2x1xf32>
    %66 = arith.cmpf oge, %64, %65 : vector<2x1xf32>
    %67 = arith.select %66, %56, %54 : vector<2x1xi1>, vector<2x1xi32>
    %c134217728_i32 = arith.constant 134217728 : i32
    %68 = vector.broadcast %c134217728_i32 : i32 to vector<2x1xi32>
    %69 = arith.ori %67, %68 : vector<2x1xi32>
    %c-2147483648_i32_17 = arith.constant -2147483648 : i32
    %70 = vector.broadcast %c-2147483648_i32_17 : i32 to vector<2x1xi32>
    %71 = arith.xori %69, %70 : vector<2x1xi32>
    %72 = vector.broadcast %71 : vector<2x1xi32> to vector<2x1024xi32>
    %73 = arith.cmpi sge, %14, %72 : vector<2x1024xi32>
    %74 = arith.extui %73 : vector<2x1024xi1> to vector<2x1024xi32>
    %75 = arith.sitofp %74 : vector<2x1024xi32> to vector<2x1024xf32>
    %cst_18 = arith.constant dense<0.000000e+00> : vector<2xf32>
    %76 = vector.multi_reduction <add>, %75, %cst_18 [1] : vector<2x1024xf32> to vector<2xf32>
    %77 = vector.shape_cast %76 : vector<2xf32> to vector<2x1xf32>
    %cst_19 = arith.constant 3.200000e+01 : f32
    %78 = vector.broadcast %cst_19 : f32 to vector<2x1xf32>
    %79 = arith.cmpf oge, %77, %78 : vector<2x1xf32>
    %80 = arith.select %79, %69, %67 : vector<2x1xi1>, vector<2x1xi32>
    %c67108864_i32 = arith.constant 67108864 : i32
    %81 = vector.broadcast %c67108864_i32 : i32 to vector<2x1xi32>
    %82 = arith.ori %80, %81 : vector<2x1xi32>
    %c-2147483648_i32_20 = arith.constant -2147483648 : i32
    %83 = vector.broadcast %c-2147483648_i32_20 : i32 to vector<2x1xi32>
    %84 = arith.xori %82, %83 : vector<2x1xi32>
    %85 = vector.broadcast %84 : vector<2x1xi32> to vector<2x1024xi32>
    %86 = arith.cmpi sge, %14, %85 : vector<2x1024xi32>
    %87 = arith.extui %86 : vector<2x1024xi1> to vector<2x1024xi32>
    %88 = arith.sitofp %87 : vector<2x1024xi32> to vector<2x1024xf32>
    %cst_21 = arith.constant dense<0.000000e+00> : vector<2xf32>
    %89 = vector.multi_reduction <add>, %88, %cst_21 [1] : vector<2x1024xf32> to vector<2xf32>
    %90 = vector.shape_cast %89 : vector<2xf32> to vector<2x1xf32>
    %cst_22 = arith.constant 3.200000e+01 : f32
    %91 = vector.broadcast %cst_22 : f32 to vector<2x1xf32>
    %92 = arith.cmpf oge, %90, %91 : vector<2x1xf32>
    %93 = arith.select %92, %82, %80 : vector<2x1xi1>, vector<2x1xi32>
    %c33554432_i32 = arith.constant 33554432 : i32
    %94 = vector.broadcast %c33554432_i32 : i32 to vector<2x1xi32>
    %95 = arith.ori %93, %94 : vector<2x1xi32>
    %c-2147483648_i32_23 = arith.constant -2147483648 : i32
    %96 = vector.broadcast %c-2147483648_i32_23 : i32 to vector<2x1xi32>
    %97 = arith.xori %95, %96 : vector<2x1xi32>
    %98 = vector.broadcast %97 : vector<2x1xi32> to vector<2x1024xi32>
    %99 = arith.cmpi sge, %14, %98 : vector<2x1024xi32>
    %100 = arith.extui %99 : vector<2x1024xi1> to vector<2x1024xi32>
    %101 = arith.sitofp %100 : vector<2x1024xi32> to vector<2x1024xf32>
    %cst_24 = arith.constant dense<0.000000e+00> : vector<2xf32>
    %102 = vector.multi_reduction <add>, %101, %cst_24 [1] : vector<2x1024xf32> to vector<2xf32>
    %103 = vector.shape_cast %102 : vector<2xf32> to vector<2x1xf32>
    %cst_25 = arith.constant 3.200000e+01 : f32
    %104 = vector.broadcast %cst_25 : f32 to vector<2x1xf32>
    %105 = arith.cmpf oge, %103, %104 : vector<2x1xf32>
    %106 = arith.select %105, %95, %93 : vector<2x1xi1>, vector<2x1xi32>
    %c16777216_i32 = arith.constant 16777216 : i32
    %107 = vector.broadcast %c16777216_i32 : i32 to vector<2x1xi32>
    %108 = arith.ori %106, %107 : vector<2x1xi32>
    %c-2147483648_i32_26 = arith.constant -2147483648 : i32
    %109 = vector.broadcast %c-2147483648_i32_26 : i32 to vector<2x1xi32>
    %110 = arith.xori %108, %109 : vector<2x1xi32>
    %111 = vector.broadcast %110 : vector<2x1xi32> to vector<2x1024xi32>
    %112 = arith.cmpi sge, %14, %111 : vector<2x1024xi32>
    %113 = arith.extui %112 : vector<2x1024xi1> to vector<2x1024xi32>
    %114 = arith.sitofp %113 : vector<2x1024xi32> to vector<2x1024xf32>
    %cst_27 = arith.constant dense<0.000000e+00> : vector<2xf32>
    %115 = vector.multi_reduction <add>, %114, %cst_27 [1] : vector<2x1024xf32> to vector<2xf32>
    %116 = vector.shape_cast %115 : vector<2xf32> to vector<2x1xf32>
    %cst_28 = arith.constant 3.200000e+01 : f32
    %117 = vector.broadcast %cst_28 : f32 to vector<2x1xf32>
    %118 = arith.cmpf oge, %116, %117 : vector<2x1xf32>
    %119 = arith.select %118, %108, %106 : vector<2x1xi1>, vector<2x1xi32>
    %c8388608_i32 = arith.constant 8388608 : i32
    %120 = vector.broadcast %c8388608_i32 : i32 to vector<2x1xi32>
    %121 = arith.ori %119, %120 : vector<2x1xi32>
    %c-2147483648_i32_29 = arith.constant -2147483648 : i32
    %122 = vector.broadcast %c-2147483648_i32_29 : i32 to vector<2x1xi32>
    %123 = arith.xori %121, %122 : vector<2x1xi32>
    %124 = vector.broadcast %123 : vector<2x1xi32> to vector<2x1024xi32>
    %125 = arith.cmpi sge, %14, %124 : vector<2x1024xi32>
    %126 = arith.extui %125 : vector<2x1024xi1> to vector<2x1024xi32>
    %127 = arith.sitofp %126 : vector<2x1024xi32> to vector<2x1024xf32>
    %cst_30 = arith.constant dense<0.000000e+00> : vector<2xf32>
    %128 = vector.multi_reduction <add>, %127, %cst_30 [1] : vector<2x1024xf32> to vector<2xf32>
    %129 = vector.shape_cast %128 : vector<2xf32> to vector<2x1xf32>
    %cst_31 = arith.constant 3.200000e+01 : f32
    %130 = vector.broadcast %cst_31 : f32 to vector<2x1xf32>
    %131 = arith.cmpf oge, %129, %130 : vector<2x1xf32>
    %132 = arith.select %131, %121, %119 : vector<2x1xi1>, vector<2x1xi32>
    %c4194304_i32 = arith.constant 4194304 : i32
    %133 = vector.broadcast %c4194304_i32 : i32 to vector<2x1xi32>
    %134 = arith.ori %132, %133 : vector<2x1xi32>
    %c-2147483648_i32_32 = arith.constant -2147483648 : i32
    %135 = vector.broadcast %c-2147483648_i32_32 : i32 to vector<2x1xi32>
    %136 = arith.xori %134, %135 : vector<2x1xi32>
    %137 = vector.broadcast %136 : vector<2x1xi32> to vector<2x1024xi32>
    %138 = arith.cmpi sge, %14, %137 : vector<2x1024xi32>
    %139 = arith.extui %138 : vector<2x1024xi1> to vector<2x1024xi32>
    %140 = arith.sitofp %139 : vector<2x1024xi32> to vector<2x1024xf32>
    %cst_33 = arith.constant dense<0.000000e+00> : vector<2xf32>
    %141 = vector.multi_reduction <add>, %140, %cst_33 [1] : vector<2x1024xf32> to vector<2xf32>
    %142 = vector.shape_cast %141 : vector<2xf32> to vector<2x1xf32>
    %cst_34 = arith.constant 3.200000e+01 : f32
    %143 = vector.broadcast %cst_34 : f32 to vector<2x1xf32>
    %144 = arith.cmpf oge, %142, %143 : vector<2x1xf32>
    %145 = arith.select %144, %134, %132 : vector<2x1xi1>, vector<2x1xi32>
    %c2097152_i32 = arith.constant 2097152 : i32
    %146 = vector.broadcast %c2097152_i32 : i32 to vector<2x1xi32>
    %147 = arith.ori %145, %146 : vector<2x1xi32>
    %c-2147483648_i32_35 = arith.constant -2147483648 : i32
    %148 = vector.broadcast %c-2147483648_i32_35 : i32 to vector<2x1xi32>
    %149 = arith.xori %147, %148 : vector<2x1xi32>
    %150 = vector.broadcast %149 : vector<2x1xi32> to vector<2x1024xi32>
    %151 = arith.cmpi sge, %14, %150 : vector<2x1024xi32>
    %152 = arith.extui %151 : vector<2x1024xi1> to vector<2x1024xi32>
    %153 = arith.sitofp %152 : vector<2x1024xi32> to vector<2x1024xf32>
    %cst_36 = arith.constant dense<0.000000e+00> : vector<2xf32>
    %154 = vector.multi_reduction <add>, %153, %cst_36 [1] : vector<2x1024xf32> to vector<2xf32>
    %155 = vector.shape_cast %154 : vector<2xf32> to vector<2x1xf32>
    %cst_37 = arith.constant 3.200000e+01 : f32
    %156 = vector.broadcast %cst_37 : f32 to vector<2x1xf32>
    %157 = arith.cmpf oge, %155, %156 : vector<2x1xf32>
    %158 = arith.select %157, %147, %145 : vector<2x1xi1>, vector<2x1xi32>
    %c1048576_i32 = arith.constant 1048576 : i32
    %159 = vector.broadcast %c1048576_i32 : i32 to vector<2x1xi32>
    %160 = arith.ori %158, %159 : vector<2x1xi32>
    %c-2147483648_i32_38 = arith.constant -2147483648 : i32
    %161 = vector.broadcast %c-2147483648_i32_38 : i32 to vector<2x1xi32>
    %162 = arith.xori %160, %161 : vector<2x1xi32>
    %163 = vector.broadcast %162 : vector<2x1xi32> to vector<2x1024xi32>
    %164 = arith.cmpi sge, %14, %163 : vector<2x1024xi32>
    %165 = arith.extui %164 : vector<2x1024xi1> to vector<2x1024xi32>
    %166 = arith.sitofp %165 : vector<2x1024xi32> to vector<2x1024xf32>
    %cst_39 = arith.constant dense<0.000000e+00> : vector<2xf32>
    %167 = vector.multi_reduction <add>, %166, %cst_39 [1] : vector<2x1024xf32> to vector<2xf32>
    %168 = vector.shape_cast %167 : vector<2xf32> to vector<2x1xf32>
    %cst_40 = arith.constant 3.200000e+01 : f32
    %169 = vector.broadcast %cst_40 : f32 to vector<2x1xf32>
    %170 = arith.cmpf oge, %168, %169 : vector<2x1xf32>
    %171 = arith.select %170, %160, %158 : vector<2x1xi1>, vector<2x1xi32>
    %c524288_i32 = arith.constant 524288 : i32
    %172 = vector.broadcast %c524288_i32 : i32 to vector<2x1xi32>
    %173 = arith.ori %171, %172 : vector<2x1xi32>
    %c-2147483648_i32_41 = arith.constant -2147483648 : i32
    %174 = vector.broadcast %c-2147483648_i32_41 : i32 to vector<2x1xi32>
    %175 = arith.xori %173, %174 : vector<2x1xi32>
    %176 = vector.broadcast %175 : vector<2x1xi32> to vector<2x1024xi32>
    %177 = arith.cmpi sge, %14, %176 : vector<2x1024xi32>
    %178 = arith.extui %177 : vector<2x1024xi1> to vector<2x1024xi32>
    %179 = arith.sitofp %178 : vector<2x1024xi32> to vector<2x1024xf32>
    %cst_42 = arith.constant dense<0.000000e+00> : vector<2xf32>
    %180 = vector.multi_reduction <add>, %179, %cst_42 [1] : vector<2x1024xf32> to vector<2xf32>
    %181 = vector.shape_cast %180 : vector<2xf32> to vector<2x1xf32>
    %cst_43 = arith.constant 3.200000e+01 : f32
    %182 = vector.broadcast %cst_43 : f32 to vector<2x1xf32>
    %183 = arith.cmpf oge, %181, %182 : vector<2x1xf32>
    %184 = arith.select %183, %173, %171 : vector<2x1xi1>, vector<2x1xi32>
    %c262144_i32 = arith.constant 262144 : i32
    %185 = vector.broadcast %c262144_i32 : i32 to vector<2x1xi32>
    %186 = arith.ori %184, %185 : vector<2x1xi32>
    %c-2147483648_i32_44 = arith.constant -2147483648 : i32
    %187 = vector.broadcast %c-2147483648_i32_44 : i32 to vector<2x1xi32>
    %188 = arith.xori %186, %187 : vector<2x1xi32>
    %189 = vector.broadcast %188 : vector<2x1xi32> to vector<2x1024xi32>
    %190 = arith.cmpi sge, %14, %189 : vector<2x1024xi32>
    %191 = arith.extui %190 : vector<2x1024xi1> to vector<2x1024xi32>
    %192 = arith.sitofp %191 : vector<2x1024xi32> to vector<2x1024xf32>
    %cst_45 = arith.constant dense<0.000000e+00> : vector<2xf32>
    %193 = vector.multi_reduction <add>, %192, %cst_45 [1] : vector<2x1024xf32> to vector<2xf32>
    %194 = vector.shape_cast %193 : vector<2xf32> to vector<2x1xf32>
    %cst_46 = arith.constant 3.200000e+01 : f32
    %195 = vector.broadcast %cst_46 : f32 to vector<2x1xf32>
    %196 = arith.cmpf oge, %194, %195 : vector<2x1xf32>
    %197 = arith.select %196, %186, %184 : vector<2x1xi1>, vector<2x1xi32>
    %c131072_i32 = arith.constant 131072 : i32
    %198 = vector.broadcast %c131072_i32 : i32 to vector<2x1xi32>
    %199 = arith.ori %197, %198 : vector<2x1xi32>
    %c-2147483648_i32_47 = arith.constant -2147483648 : i32
    %200 = vector.broadcast %c-2147483648_i32_47 : i32 to vector<2x1xi32>
    %201 = arith.xori %199, %200 : vector<2x1xi32>
    %202 = vector.broadcast %201 : vector<2x1xi32> to vector<2x1024xi32>
    %203 = arith.cmpi sge, %14, %202 : vector<2x1024xi32>
    %204 = arith.extui %203 : vector<2x1024xi1> to vector<2x1024xi32>
    %205 = arith.sitofp %204 : vector<2x1024xi32> to vector<2x1024xf32>
    %cst_48 = arith.constant dense<0.000000e+00> : vector<2xf32>
    %206 = vector.multi_reduction <add>, %205, %cst_48 [1] : vector<2x1024xf32> to vector<2xf32>
    %207 = vector.shape_cast %206 : vector<2xf32> to vector<2x1xf32>
    %cst_49 = arith.constant 3.200000e+01 : f32
    %208 = vector.broadcast %cst_49 : f32 to vector<2x1xf32>
    %209 = arith.cmpf oge, %207, %208 : vector<2x1xf32>
    %210 = arith.select %209, %199, %197 : vector<2x1xi1>, vector<2x1xi32>
    %c65536_i32 = arith.constant 65536 : i32
    %211 = vector.broadcast %c65536_i32 : i32 to vector<2x1xi32>
    %212 = arith.ori %210, %211 : vector<2x1xi32>
    %c-2147483648_i32_50 = arith.constant -2147483648 : i32
    %213 = vector.broadcast %c-2147483648_i32_50 : i32 to vector<2x1xi32>
    %214 = arith.xori %212, %213 : vector<2x1xi32>
    %215 = vector.broadcast %214 : vector<2x1xi32> to vector<2x1024xi32>
    %216 = arith.cmpi sge, %14, %215 : vector<2x1024xi32>
    %217 = arith.extui %216 : vector<2x1024xi1> to vector<2x1024xi32>
    %218 = arith.sitofp %217 : vector<2x1024xi32> to vector<2x1024xf32>
    %cst_51 = arith.constant dense<0.000000e+00> : vector<2xf32>
    %219 = vector.multi_reduction <add>, %218, %cst_51 [1] : vector<2x1024xf32> to vector<2xf32>
    %220 = vector.shape_cast %219 : vector<2xf32> to vector<2x1xf32>
    %cst_52 = arith.constant 3.200000e+01 : f32
    %221 = vector.broadcast %cst_52 : f32 to vector<2x1xf32>
    %222 = arith.cmpf oge, %220, %221 : vector<2x1xf32>
    %223 = arith.select %222, %212, %210 : vector<2x1xi1>, vector<2x1xi32>
    %c32768_i32 = arith.constant 32768 : i32
    %224 = vector.broadcast %c32768_i32 : i32 to vector<2x1xi32>
    %225 = arith.ori %223, %224 : vector<2x1xi32>
    %c-2147483648_i32_53 = arith.constant -2147483648 : i32
    %226 = vector.broadcast %c-2147483648_i32_53 : i32 to vector<2x1xi32>
    %227 = arith.xori %225, %226 : vector<2x1xi32>
    %228 = vector.broadcast %227 : vector<2x1xi32> to vector<2x1024xi32>
    %229 = arith.cmpi sge, %14, %228 : vector<2x1024xi32>
    %230 = arith.extui %229 : vector<2x1024xi1> to vector<2x1024xi32>
    %231 = arith.sitofp %230 : vector<2x1024xi32> to vector<2x1024xf32>
    %cst_54 = arith.constant dense<0.000000e+00> : vector<2xf32>
    %232 = vector.multi_reduction <add>, %231, %cst_54 [1] : vector<2x1024xf32> to vector<2xf32>
    %233 = vector.shape_cast %232 : vector<2xf32> to vector<2x1xf32>
    %cst_55 = arith.constant 3.200000e+01 : f32
    %234 = vector.broadcast %cst_55 : f32 to vector<2x1xf32>
    %235 = arith.cmpf oge, %233, %234 : vector<2x1xf32>
    %236 = arith.select %235, %225, %223 : vector<2x1xi1>, vector<2x1xi32>
    %c16384_i32 = arith.constant 16384 : i32
    %237 = vector.broadcast %c16384_i32 : i32 to vector<2x1xi32>
    %238 = arith.ori %236, %237 : vector<2x1xi32>
    %c-2147483648_i32_56 = arith.constant -2147483648 : i32
    %239 = vector.broadcast %c-2147483648_i32_56 : i32 to vector<2x1xi32>
    %240 = arith.xori %238, %239 : vector<2x1xi32>
    %241 = vector.broadcast %240 : vector<2x1xi32> to vector<2x1024xi32>
    %242 = arith.cmpi sge, %14, %241 : vector<2x1024xi32>
    %243 = arith.extui %242 : vector<2x1024xi1> to vector<2x1024xi32>
    %244 = arith.sitofp %243 : vector<2x1024xi32> to vector<2x1024xf32>
    %cst_57 = arith.constant dense<0.000000e+00> : vector<2xf32>
    %245 = vector.multi_reduction <add>, %244, %cst_57 [1] : vector<2x1024xf32> to vector<2xf32>
    %246 = vector.shape_cast %245 : vector<2xf32> to vector<2x1xf32>
    %cst_58 = arith.constant 3.200000e+01 : f32
    %247 = vector.broadcast %cst_58 : f32 to vector<2x1xf32>
    %248 = arith.cmpf oge, %246, %247 : vector<2x1xf32>
    %249 = arith.select %248, %238, %236 : vector<2x1xi1>, vector<2x1xi32>
    %c8192_i32 = arith.constant 8192 : i32
    %250 = vector.broadcast %c8192_i32 : i32 to vector<2x1xi32>
    %251 = arith.ori %249, %250 : vector<2x1xi32>
    %c-2147483648_i32_59 = arith.constant -2147483648 : i32
    %252 = vector.broadcast %c-2147483648_i32_59 : i32 to vector<2x1xi32>
    %253 = arith.xori %251, %252 : vector<2x1xi32>
    %254 = vector.broadcast %253 : vector<2x1xi32> to vector<2x1024xi32>
    %255 = arith.cmpi sge, %14, %254 : vector<2x1024xi32>
    %256 = arith.extui %255 : vector<2x1024xi1> to vector<2x1024xi32>
    %257 = arith.sitofp %256 : vector<2x1024xi32> to vector<2x1024xf32>
    %cst_60 = arith.constant dense<0.000000e+00> : vector<2xf32>
    %258 = vector.multi_reduction <add>, %257, %cst_60 [1] : vector<2x1024xf32> to vector<2xf32>
    %259 = vector.shape_cast %258 : vector<2xf32> to vector<2x1xf32>
    %cst_61 = arith.constant 3.200000e+01 : f32
    %260 = vector.broadcast %cst_61 : f32 to vector<2x1xf32>
    %261 = arith.cmpf oge, %259, %260 : vector<2x1xf32>
    %262 = arith.select %261, %251, %249 : vector<2x1xi1>, vector<2x1xi32>
    %c4096_i32 = arith.constant 4096 : i32
    %263 = vector.broadcast %c4096_i32 : i32 to vector<2x1xi32>
    %264 = arith.ori %262, %263 : vector<2x1xi32>
    %c-2147483648_i32_62 = arith.constant -2147483648 : i32
    %265 = vector.broadcast %c-2147483648_i32_62 : i32 to vector<2x1xi32>
    %266 = arith.xori %264, %265 : vector<2x1xi32>
    %267 = vector.broadcast %266 : vector<2x1xi32> to vector<2x1024xi32>
    %268 = arith.cmpi sge, %14, %267 : vector<2x1024xi32>
    %269 = arith.extui %268 : vector<2x1024xi1> to vector<2x1024xi32>
    %270 = arith.sitofp %269 : vector<2x1024xi32> to vector<2x1024xf32>
    %cst_63 = arith.constant dense<0.000000e+00> : vector<2xf32>
    %271 = vector.multi_reduction <add>, %270, %cst_63 [1] : vector<2x1024xf32> to vector<2xf32>
    %272 = vector.shape_cast %271 : vector<2xf32> to vector<2x1xf32>
    %cst_64 = arith.constant 3.200000e+01 : f32
    %273 = vector.broadcast %cst_64 : f32 to vector<2x1xf32>
    %274 = arith.cmpf oge, %272, %273 : vector<2x1xf32>
    %275 = arith.select %274, %264, %262 : vector<2x1xi1>, vector<2x1xi32>
    %c2048_i32 = arith.constant 2048 : i32
    %276 = vector.broadcast %c2048_i32 : i32 to vector<2x1xi32>
    %277 = arith.ori %275, %276 : vector<2x1xi32>
    %c-2147483648_i32_65 = arith.constant -2147483648 : i32
    %278 = vector.broadcast %c-2147483648_i32_65 : i32 to vector<2x1xi32>
    %279 = arith.xori %277, %278 : vector<2x1xi32>
    %280 = vector.broadcast %279 : vector<2x1xi32> to vector<2x1024xi32>
    %281 = arith.cmpi sge, %14, %280 : vector<2x1024xi32>
    %282 = arith.extui %281 : vector<2x1024xi1> to vector<2x1024xi32>
    %283 = arith.sitofp %282 : vector<2x1024xi32> to vector<2x1024xf32>
    %cst_66 = arith.constant dense<0.000000e+00> : vector<2xf32>
    %284 = vector.multi_reduction <add>, %283, %cst_66 [1] : vector<2x1024xf32> to vector<2xf32>
    %285 = vector.shape_cast %284 : vector<2xf32> to vector<2x1xf32>
    %cst_67 = arith.constant 3.200000e+01 : f32
    %286 = vector.broadcast %cst_67 : f32 to vector<2x1xf32>
    %287 = arith.cmpf oge, %285, %286 : vector<2x1xf32>
    %288 = arith.select %287, %277, %275 : vector<2x1xi1>, vector<2x1xi32>
    %c1024_i32 = arith.constant 1024 : i32
    %289 = vector.broadcast %c1024_i32 : i32 to vector<2x1xi32>
    %290 = arith.ori %288, %289 : vector<2x1xi32>
    %c-2147483648_i32_68 = arith.constant -2147483648 : i32
    %291 = vector.broadcast %c-2147483648_i32_68 : i32 to vector<2x1xi32>
    %292 = arith.xori %290, %291 : vector<2x1xi32>
    %293 = vector.broadcast %292 : vector<2x1xi32> to vector<2x1024xi32>
    %294 = arith.cmpi sge, %14, %293 : vector<2x1024xi32>
    %295 = arith.extui %294 : vector<2x1024xi1> to vector<2x1024xi32>
    %296 = arith.sitofp %295 : vector<2x1024xi32> to vector<2x1024xf32>
    %cst_69 = arith.constant dense<0.000000e+00> : vector<2xf32>
    %297 = vector.multi_reduction <add>, %296, %cst_69 [1] : vector<2x1024xf32> to vector<2xf32>
    %298 = vector.shape_cast %297 : vector<2xf32> to vector<2x1xf32>
    %cst_70 = arith.constant 3.200000e+01 : f32
    %299 = vector.broadcast %cst_70 : f32 to vector<2x1xf32>
    %300 = arith.cmpf oge, %298, %299 : vector<2x1xf32>
    %301 = arith.select %300, %290, %288 : vector<2x1xi1>, vector<2x1xi32>
    %c512_i32 = arith.constant 512 : i32
    %302 = vector.broadcast %c512_i32 : i32 to vector<2x1xi32>
    %303 = arith.ori %301, %302 : vector<2x1xi32>
    %c-2147483648_i32_71 = arith.constant -2147483648 : i32
    %304 = vector.broadcast %c-2147483648_i32_71 : i32 to vector<2x1xi32>
    %305 = arith.xori %303, %304 : vector<2x1xi32>
    %306 = vector.broadcast %305 : vector<2x1xi32> to vector<2x1024xi32>
    %307 = arith.cmpi sge, %14, %306 : vector<2x1024xi32>
    %308 = arith.extui %307 : vector<2x1024xi1> to vector<2x1024xi32>
    %309 = arith.sitofp %308 : vector<2x1024xi32> to vector<2x1024xf32>
    %cst_72 = arith.constant dense<0.000000e+00> : vector<2xf32>
    %310 = vector.multi_reduction <add>, %309, %cst_72 [1] : vector<2x1024xf32> to vector<2xf32>
    %311 = vector.shape_cast %310 : vector<2xf32> to vector<2x1xf32>
    %cst_73 = arith.constant 3.200000e+01 : f32
    %312 = vector.broadcast %cst_73 : f32 to vector<2x1xf32>
    %313 = arith.cmpf oge, %311, %312 : vector<2x1xf32>
    %314 = arith.select %313, %303, %301 : vector<2x1xi1>, vector<2x1xi32>
    %c256_i32 = arith.constant 256 : i32
    %315 = vector.broadcast %c256_i32 : i32 to vector<2x1xi32>
    %316 = arith.ori %314, %315 : vector<2x1xi32>
    %c-2147483648_i32_74 = arith.constant -2147483648 : i32
    %317 = vector.broadcast %c-2147483648_i32_74 : i32 to vector<2x1xi32>
    %318 = arith.xori %316, %317 : vector<2x1xi32>
    %319 = vector.broadcast %318 : vector<2x1xi32> to vector<2x1024xi32>
    %320 = arith.cmpi sge, %14, %319 : vector<2x1024xi32>
    %321 = arith.extui %320 : vector<2x1024xi1> to vector<2x1024xi32>
    %322 = arith.sitofp %321 : vector<2x1024xi32> to vector<2x1024xf32>
    %cst_75 = arith.constant dense<0.000000e+00> : vector<2xf32>
    %323 = vector.multi_reduction <add>, %322, %cst_75 [1] : vector<2x1024xf32> to vector<2xf32>
    %324 = vector.shape_cast %323 : vector<2xf32> to vector<2x1xf32>
    %cst_76 = arith.constant 3.200000e+01 : f32
    %325 = vector.broadcast %cst_76 : f32 to vector<2x1xf32>
    %326 = arith.cmpf oge, %324, %325 : vector<2x1xf32>
    %327 = arith.select %326, %316, %314 : vector<2x1xi1>, vector<2x1xi32>
    %c128_i32 = arith.constant 128 : i32
    %328 = vector.broadcast %c128_i32 : i32 to vector<2x1xi32>
    %329 = arith.ori %327, %328 : vector<2x1xi32>
    %c-2147483648_i32_77 = arith.constant -2147483648 : i32
    %330 = vector.broadcast %c-2147483648_i32_77 : i32 to vector<2x1xi32>
    %331 = arith.xori %329, %330 : vector<2x1xi32>
    %332 = vector.broadcast %331 : vector<2x1xi32> to vector<2x1024xi32>
    %333 = arith.cmpi sge, %14, %332 : vector<2x1024xi32>
    %334 = arith.extui %333 : vector<2x1024xi1> to vector<2x1024xi32>
    %335 = arith.sitofp %334 : vector<2x1024xi32> to vector<2x1024xf32>
    %cst_78 = arith.constant dense<0.000000e+00> : vector<2xf32>
    %336 = vector.multi_reduction <add>, %335, %cst_78 [1] : vector<2x1024xf32> to vector<2xf32>
    %337 = vector.shape_cast %336 : vector<2xf32> to vector<2x1xf32>
    %cst_79 = arith.constant 3.200000e+01 : f32
    %338 = vector.broadcast %cst_79 : f32 to vector<2x1xf32>
    %339 = arith.cmpf oge, %337, %338 : vector<2x1xf32>
    %340 = arith.select %339, %329, %327 : vector<2x1xi1>, vector<2x1xi32>
    %c64_i32 = arith.constant 64 : i32
    %341 = vector.broadcast %c64_i32 : i32 to vector<2x1xi32>
    %342 = arith.ori %340, %341 : vector<2x1xi32>
    %c-2147483648_i32_80 = arith.constant -2147483648 : i32
    %343 = vector.broadcast %c-2147483648_i32_80 : i32 to vector<2x1xi32>
    %344 = arith.xori %342, %343 : vector<2x1xi32>
    %345 = vector.broadcast %344 : vector<2x1xi32> to vector<2x1024xi32>
    %346 = arith.cmpi sge, %14, %345 : vector<2x1024xi32>
    %347 = arith.extui %346 : vector<2x1024xi1> to vector<2x1024xi32>
    %348 = arith.sitofp %347 : vector<2x1024xi32> to vector<2x1024xf32>
    %cst_81 = arith.constant dense<0.000000e+00> : vector<2xf32>
    %349 = vector.multi_reduction <add>, %348, %cst_81 [1] : vector<2x1024xf32> to vector<2xf32>
    %350 = vector.shape_cast %349 : vector<2xf32> to vector<2x1xf32>
    %cst_82 = arith.constant 3.200000e+01 : f32
    %351 = vector.broadcast %cst_82 : f32 to vector<2x1xf32>
    %352 = arith.cmpf oge, %350, %351 : vector<2x1xf32>
    %353 = arith.select %352, %342, %340 : vector<2x1xi1>, vector<2x1xi32>
    %c32_i32 = arith.constant 32 : i32
    %354 = vector.broadcast %c32_i32 : i32 to vector<2x1xi32>
    %355 = arith.ori %353, %354 : vector<2x1xi32>
    %c-2147483648_i32_83 = arith.constant -2147483648 : i32
    %356 = vector.broadcast %c-2147483648_i32_83 : i32 to vector<2x1xi32>
    %357 = arith.xori %355, %356 : vector<2x1xi32>
    %358 = vector.broadcast %357 : vector<2x1xi32> to vector<2x1024xi32>
    %359 = arith.cmpi sge, %14, %358 : vector<2x1024xi32>
    %360 = arith.extui %359 : vector<2x1024xi1> to vector<2x1024xi32>
    %361 = arith.sitofp %360 : vector<2x1024xi32> to vector<2x1024xf32>
    %cst_84 = arith.constant dense<0.000000e+00> : vector<2xf32>
    %362 = vector.multi_reduction <add>, %361, %cst_84 [1] : vector<2x1024xf32> to vector<2xf32>
    %363 = vector.shape_cast %362 : vector<2xf32> to vector<2x1xf32>
    %cst_85 = arith.constant 3.200000e+01 : f32
    %364 = vector.broadcast %cst_85 : f32 to vector<2x1xf32>
    %365 = arith.cmpf oge, %363, %364 : vector<2x1xf32>
    %366 = arith.select %365, %355, %353 : vector<2x1xi1>, vector<2x1xi32>
    %c16_i32 = arith.constant 16 : i32
    %367 = vector.broadcast %c16_i32 : i32 to vector<2x1xi32>
    %368 = arith.ori %366, %367 : vector<2x1xi32>
    %c-2147483648_i32_86 = arith.constant -2147483648 : i32
    %369 = vector.broadcast %c-2147483648_i32_86 : i32 to vector<2x1xi32>
    %370 = arith.xori %368, %369 : vector<2x1xi32>
    %371 = vector.broadcast %370 : vector<2x1xi32> to vector<2x1024xi32>
    %372 = arith.cmpi sge, %14, %371 : vector<2x1024xi32>
    %373 = arith.extui %372 : vector<2x1024xi1> to vector<2x1024xi32>
    %374 = arith.sitofp %373 : vector<2x1024xi32> to vector<2x1024xf32>
    %cst_87 = arith.constant dense<0.000000e+00> : vector<2xf32>
    %375 = vector.multi_reduction <add>, %374, %cst_87 [1] : vector<2x1024xf32> to vector<2xf32>
    %376 = vector.shape_cast %375 : vector<2xf32> to vector<2x1xf32>
    %cst_88 = arith.constant 3.200000e+01 : f32
    %377 = vector.broadcast %cst_88 : f32 to vector<2x1xf32>
    %378 = arith.cmpf oge, %376, %377 : vector<2x1xf32>
    %379 = arith.select %378, %368, %366 : vector<2x1xi1>, vector<2x1xi32>
    %c8_i32 = arith.constant 8 : i32
    %380 = vector.broadcast %c8_i32 : i32 to vector<2x1xi32>
    %381 = arith.ori %379, %380 : vector<2x1xi32>
    %c-2147483648_i32_89 = arith.constant -2147483648 : i32
    %382 = vector.broadcast %c-2147483648_i32_89 : i32 to vector<2x1xi32>
    %383 = arith.xori %381, %382 : vector<2x1xi32>
    %384 = vector.broadcast %383 : vector<2x1xi32> to vector<2x1024xi32>
    %385 = arith.cmpi sge, %14, %384 : vector<2x1024xi32>
    %386 = arith.extui %385 : vector<2x1024xi1> to vector<2x1024xi32>
    %387 = arith.sitofp %386 : vector<2x1024xi32> to vector<2x1024xf32>
    %cst_90 = arith.constant dense<0.000000e+00> : vector<2xf32>
    %388 = vector.multi_reduction <add>, %387, %cst_90 [1] : vector<2x1024xf32> to vector<2xf32>
    %389 = vector.shape_cast %388 : vector<2xf32> to vector<2x1xf32>
    %cst_91 = arith.constant 3.200000e+01 : f32
    %390 = vector.broadcast %cst_91 : f32 to vector<2x1xf32>
    %391 = arith.cmpf oge, %389, %390 : vector<2x1xf32>
    %392 = arith.select %391, %381, %379 : vector<2x1xi1>, vector<2x1xi32>
    %c4_i32 = arith.constant 4 : i32
    %393 = vector.broadcast %c4_i32 : i32 to vector<2x1xi32>
    %394 = arith.ori %392, %393 : vector<2x1xi32>
    %c-2147483648_i32_92 = arith.constant -2147483648 : i32
    %395 = vector.broadcast %c-2147483648_i32_92 : i32 to vector<2x1xi32>
    %396 = arith.xori %394, %395 : vector<2x1xi32>
    %397 = vector.broadcast %396 : vector<2x1xi32> to vector<2x1024xi32>
    %398 = arith.cmpi sge, %14, %397 : vector<2x1024xi32>
    %399 = arith.extui %398 : vector<2x1024xi1> to vector<2x1024xi32>
    %400 = arith.sitofp %399 : vector<2x1024xi32> to vector<2x1024xf32>
    %cst_93 = arith.constant dense<0.000000e+00> : vector<2xf32>
    %401 = vector.multi_reduction <add>, %400, %cst_93 [1] : vector<2x1024xf32> to vector<2xf32>
    %402 = vector.shape_cast %401 : vector<2xf32> to vector<2x1xf32>
    %cst_94 = arith.constant 3.200000e+01 : f32
    %403 = vector.broadcast %cst_94 : f32 to vector<2x1xf32>
    %404 = arith.cmpf oge, %402, %403 : vector<2x1xf32>
    %405 = arith.select %404, %394, %392 : vector<2x1xi1>, vector<2x1xi32>
    %c2_i32 = arith.constant 2 : i32
    %406 = vector.broadcast %c2_i32 : i32 to vector<2x1xi32>
    %407 = arith.ori %405, %406 : vector<2x1xi32>
    %c-2147483648_i32_95 = arith.constant -2147483648 : i32
    %408 = vector.broadcast %c-2147483648_i32_95 : i32 to vector<2x1xi32>
    %409 = arith.xori %407, %408 : vector<2x1xi32>
    %410 = vector.broadcast %409 : vector<2x1xi32> to vector<2x1024xi32>
    %411 = arith.cmpi sge, %14, %410 : vector<2x1024xi32>
    %412 = arith.extui %411 : vector<2x1024xi1> to vector<2x1024xi32>
    %413 = arith.sitofp %412 : vector<2x1024xi32> to vector<2x1024xf32>
    %cst_96 = arith.constant dense<0.000000e+00> : vector<2xf32>
    %414 = vector.multi_reduction <add>, %413, %cst_96 [1] : vector<2x1024xf32> to vector<2xf32>
    %415 = vector.shape_cast %414 : vector<2xf32> to vector<2x1xf32>
    %cst_97 = arith.constant 3.200000e+01 : f32
    %416 = vector.broadcast %cst_97 : f32 to vector<2x1xf32>
    %417 = arith.cmpf oge, %415, %416 : vector<2x1xf32>
    %418 = arith.select %417, %407, %405 : vector<2x1xi1>, vector<2x1xi32>
    %c1_i32 = arith.constant 1 : i32
    %419 = vector.broadcast %c1_i32 : i32 to vector<2x1xi32>
    %420 = arith.ori %418, %419 : vector<2x1xi32>
    %c-2147483648_i32_98 = arith.constant -2147483648 : i32
    %421 = vector.broadcast %c-2147483648_i32_98 : i32 to vector<2x1xi32>
    %422 = arith.xori %420, %421 : vector<2x1xi32>
    %423 = vector.broadcast %422 : vector<2x1xi32> to vector<2x1024xi32>
    %424 = arith.cmpi sge, %14, %423 : vector<2x1024xi32>
    %425 = arith.extui %424 : vector<2x1024xi1> to vector<2x1024xi32>
    %426 = arith.sitofp %425 : vector<2x1024xi32> to vector<2x1024xf32>
    %cst_99 = arith.constant dense<0.000000e+00> : vector<2xf32>
    %427 = vector.multi_reduction <add>, %426, %cst_99 [1] : vector<2x1024xf32> to vector<2xf32>
    %428 = vector.shape_cast %427 : vector<2xf32> to vector<2x1xf32>
    %cst_100 = arith.constant 3.200000e+01 : f32
    %429 = vector.broadcast %cst_100 : f32 to vector<2x1xf32>
    %430 = arith.cmpf oge, %428, %429 : vector<2x1xf32>
    %431 = arith.select %430, %420, %418 : vector<2x1xi1>, vector<2x1xi32>
    %c-2147483648_i32_101 = arith.constant -2147483648 : i32
    %432 = vector.broadcast %c-2147483648_i32_101 : i32 to vector<2x1xi32>
    %433 = arith.xori %431, %432 : vector<2x1xi32>
    %434 = vector.broadcast %433 : vector<2x1xi32> to vector<2x1024xi32>
    %435 = arith.cmpi sge, %14, %434 : vector<2x1024xi32>
    %cst_102 = arith.constant 0.000000e+00 : f32
    %436 = vector.broadcast %cst_102 : f32 to vector<2x1024xf32>
    %437 = arith.select %435, %0, %436 : vector<2x1024xi1>, vector<2x1024xf32>
    %c0_103 = arith.constant 0 : index
    %c0_104 = arith.constant 0 : index
    %438 = vector.load %arg3[%c0_103, %c0_104] : memref<2x1024xf32, #tpu.memory_space<vmem>>, vector<2x1024xf32>
    tpu.vector_store %arg3[%c0_103, %c0_104], %437 {strides = array<i32>} : memref<2x1024xf32, #tpu.memory_space<vmem>>, vector<2x1024xf32>,
    %cst_105 = arith.constant 0.000000e+00 : f32
    %439 = vector.broadcast %cst_105 : f32 to vector<2x1024xf32>
    %440 = arith.cmpf ogt, %437, %439 : vector<2x1024xf32>
    %cst_106 = arith.constant 1.000000e+00 : f32
    %cst_107 = arith.constant 0.000000e+00 : f32
    %441 = vector.broadcast %cst_106 : f32 to vector<2x1024xf32>
    %442 = vector.broadcast %cst_107 : f32 to vector<2x1024xf32>
    %443 = arith.select %440, %441, %442 : vector<2x1024xi1>, vector<2x1024xf32>
    %cst_108 = arith.constant dense<0.000000e+00> : vector<1024xf32>
    %444 = vector.multi_reduction <add>, %443, %cst_108 [0] : vector<2x1024xf32> to vector<1024xf32>
    %445 = vector.shape_cast %444 : vector<1024xf32> to vector<1x1024xf32>
    %446 = tpu.iota {dimensions = array<i32: 0>} : vector<8x1024xi32>
    %c0_i32_109 = arith.constant 0 : i32
    %447 = vector.broadcast %c0_i32_109 : i32 to vector<8x1024xi32>
    %448 = arith.cmpi eq, %446, %447 : vector<8x1024xi32>
    %449 = vector.shape_cast %445 : vector<1x1024xf32> to vector<1x1024xf32>
    %450 = vector.broadcast %449 : vector<1x1024xf32> to vector<8x1024xf32>
    %cst_110 = arith.constant 0.000000e+00 : f32
    %451 = vector.broadcast %cst_110 : f32 to vector<8x1024xf32>
    %452 = arith.select %448, %450, %451 : vector<8x1024xi1>, vector<8x1024xf32>
    %c0_111 = arith.constant 0 : index
    %c0_112 = arith.constant 0 : index
    %453 = vector.load %arg4[%c0_111, %c0_112] : memref<8x1024xf32, #tpu.memory_space<vmem>>, vector<8x1024xf32>
    tpu.vector_store %arg4[%c0_111, %c0_112], %452 {strides = array<i32>} : memref<8x1024xf32, #tpu.memory_space<vmem>>, vector<8x1024xf32>,
    return
  }
  func.func @transform_0(%arg0: i32) -> (i32, i32) {
    %c0_i32 = arith.constant 0 : i32
    %c0_i32_0 = arith.constant 0 : i32
    return %arg0, %c0_i32 : i32, i32
  }
  func.func @transform_1(%arg0: i32) -> (i32, i32) {
    %c0_i32 = arith.constant 0 : i32
    %c0_i32_0 = arith.constant 0 : i32
    %c0_i32_1 = arith.constant 0 : i32
    return %c0_i32, %c0_i32_0 : i32, i32
  }
  func.func @transform_2(%arg0: i32) -> (i32, i32) {
    %c0_i32 = arith.constant 0 : i32
    %c0_i32_0 = arith.constant 0 : i32
    return %arg0, %c0_i32 : i32, i32
  }
  func.func @transform_3(%arg0: i32) -> (i32, i32) {
    %c0_i32 = arith.constant 0 : i32
    %c0_i32_0 = arith.constant 0 : i32
    return %arg0, %c0_i32 : i32, i32
  }
}

</mosaic_0001>

<llo_original>
// kernel: tpu_custom_call.1
$region0: #{tpu_custom_call.1}
  #allocation0 [shape = 'u32[]', space=smem, size = 0x4, offset = 0x4, fixed_abs, tag = 'smem constant byte address 0x4 - core index']
  #allocation1 [shape = 'u32[72,128]{1,0:T(1,128)}', space=vmem, size = 0x9000, scoped, tag = 'internal scratch']
  %s0 = inlined_call_operand.hbm [shape: f32[2,1024], index: 0, kind: input, shape index: {}]
  %s1 = inlined_call_operand.hbm [shape: f32[1,1024], index: 1, kind: input, shape index: {}]
  %s2 = inlined_call_operand.hbm [shape: f32[2,1024], index: 2, kind: output, shape index: {0}]
  %s3 = inlined_call_operand.hbm [shape: f32[8,1024], index: 3, kind: output, shape index: {1}]
  %4 = xla_tuple %s2, %s3
  %s5 = sld [smem:[#allocation0]]
  $region34: #{tpu_custom_call.1} parent=0
    _
  %s7 = ssub.s32 1, %s5
  %s8 = scalar_select 0, %s7, %s5
  $region1: #{tpu_custom_call.1} parent=0
    #allocation2 [shape = 'u8[8192]{0}', space=vmem, size = 0x2000, scoped, tag = 'input window, operand 0, single buffered']
    #allocation3 [shape = 's32[1]{0}', space=sflag, size = 0x4, scoped, tag = 'scoped memory for tpu_custom_call.1']
    #allocation4 [shape = 's32[1]{0}', space=sflag, size = 0x4, scoped, tag = 'scoped memory for tpu_custom_call.1']
    #allocation5 [shape = 'u8[4096]{0}', space=vmem, size = 0x1000, scoped, tag = 'input window, operand 1, single buffered']
    #allocation6 [shape = 's32[1]{0}', space=sflag, size = 0x4, scoped, tag = 'scoped memory for tpu_custom_call.1']
    #allocation7 [shape = 'u8[8192]{0}', space=vmem, size = 0x2000, scoped, tag = 'output window, operand 0, single buffered']
    #allocation8 [shape = 'u8[32768]{0}', space=vmem, size = 0x8000, scoped, tag = 'output window, operand 1, single buffered']
    #allocation9 [shape = 's32[1]{0}', space=sflag, size = 0x4, scoped, tag = 'scoped memory for tpu_custom_call.1']
    %9 = vsyncpa [#allocation3], 0
    %10 = vsyncpa [#allocation6], 0
    %11 = vsyncpa [#allocation4], 0
    %12 = vsyncpa [#allocation9], 0
    // Predicated region
    $region2: #{tpu_custom_call.1} parent=1 // pred_check
      _
    $region3: #{tpu_custom_call.1} parent=1 // pred_check_branch
      %14 = sbr.rel (0) target = $region5
    $region4: #{tpu_custom_call.1} parent=1 // pred_region
      %16 = vsyncadd [#allocation3], 0
      %s18 = sshll.u32 %s0, 4
      %s19 = int_to_ptr.hbm [resolvable:$true] %s18
      %s20 = sshll.u32 [#allocation2], 4
      %s21 = int_to_ptr.vmem [resolvable:$true] %s20
      %23 = dma.hbm_to_vmem [thread:$0]  %s19, 256, %s21, [#allocation3]
    $region5: #{tpu_custom_call.1} parent=1 // pred_fallthru
      _
    // Predicated region
    $region6: #{tpu_custom_call.1} parent=1 // pred_check
      _
    $region7: #{tpu_custom_call.1} parent=1 // pred_check_branch
      %25 = sbr.rel (0) target = $region9
    $region8: #{tpu_custom_call.1} parent=1 // pred_region
      %27 = vsyncadd [#allocation6], 0
      %s29 = sshll.u32 %s1, 4
      %s30 = int_to_ptr.hbm [resolvable:$true] %s29
      %s31 = sshll.u32 [#allocation5], 4
      %s32 = int_to_ptr.vmem [resolvable:$true] %s31
      %34 = dma.hbm_to_vmem [thread:$0]  %s30, 128, %s32, [#allocation6]
    $region9: #{tpu_custom_call.1} parent=1 // pred_fallthru
      _
    // Predicated region
    $region10: #{tpu_custom_call.1} parent=1 // pred_check
      _
    $region11: #{tpu_custom_call.1} parent=1 // pred_check_branch
      %36 = sbr.rel (0) target = $region13
    $region12: #{tpu_custom_call.1} parent=1 // pred_region
      %38 = dma.done [#allocation3], 256
    $region13: #{tpu_custom_call.1} parent=1 // pred_fallthru
      _
    // Predicated region
    $region14: #{tpu_custom_call.1} parent=1 // pred_check
      _
    $region15: #{tpu_custom_call.1} parent=1 // pred_check_branch
      %40 = sbr.rel (0) target = $region17
    $region16: #{tpu_custom_call.1} parent=1 // pred_region
      %42 = dma.done [#allocation6], 128
    $region17: #{tpu_custom_call.1} parent=1 // pred_fallthru
      _
    %v43 = vld [vmem:[#allocation2] sm:$0xff]
    %v44 = vld [vmem:[#allocation2 + $0x8] sm:$0xff]
    %v45 = vld [vmem:[#allocation5] sm:$0xff]
    %v46 = vsub.f32 0.03125, %v45
    %v47 = vmul.f32 %v46, 1.442695
    %v48 = vpow.pop %v47
    %v50 = vperm.slane %v48, 0
    %v51 = vperm.slane %v48, 1
    %v52 = vperm.slane %v48, 2
    %v53 = vperm.slane %v48, 3
    %v54 = vperm.slane %v48, 4
    %v55 = vperm.slane %v48, 5
    %v56 = vperm.slane %v48, 6
    %v57 = vperm.slane %v48, 7
    %v58 = vrot.slane %v51, 6
    %v59 = vrot.slane %v52, 4
    %v60 = vrot.slane %v53, 2
    %v61 = vrot.slane %v55, 6
    %v62 = vrot.slane %v56, 4
    %v63 = vrot.slane %v57, 2
    %vm64 = vcmask 1041408
    %v65 = vsel %vm64, %v50, %v58
    %vm66 = vcmask 1045508
    %v67 = vsel %vm66, %v59, %v60
    %vm68 = vcmask 1043456
    %v69 = vsel %vm68, %v65, %v67
    %v70 = vsel %vm64, %v54, %v61
    %v71 = vsel %vm66, %v62, %v63
    %v72 = vsel %vm68, %v70, %v71
    %v75 = vmul.f32 %v43, %v69
    %v76 = vmul.f32 %v44, %v72
    %79 = vst [vmem:[#allocation1] ss:$4 sm:$0xff] %v75
    %s80 = scalar_lea.vmem [#allocation1], 32
    %81 = vst [vmem:[%s80] ss:$4 sm:$0xff] %v76
    %v82 = vld.sshfl [vmem:[#allocation1] sm:$0xff pattern:$0x73625140]
    %v83 = vld.sshfl [vmem:[#allocation1 + $0x8] sm:$0xff pattern:$0x73625140]
    %v84 = vld.sshfl [vmem:[#allocation1 + $0x10] sm:$0xff pattern:$0x73625140]
    %v85 = vld.sshfl [vmem:[#allocation1 + $0x18] sm:$0xff pattern:$0x73625140]
    %v86 = vld.sshfl [vmem:[#allocation1 + $0x20] sm:$0xff pattern:$0x73625140]
    %v87 = vld.sshfl [vmem:[#allocation1 + $0x28] sm:$0xff pattern:$0x73625140]
    %v88 = vld.sshfl [vmem:[#allocation1 + $0x30] sm:$0xff pattern:$0x73625140]
    %v89 = vld.sshfl [vmem:[#allocation1 + $0x38] sm:$0xff pattern:$0x73625140]
    %vm90 = vcmp.ge.s32.totalorder %v82, 0
    %vm91 = vcmp.ge.s32.totalorder %v83, 0
    %vm92 = vcmp.ge.s32.totalorder %v84, 0
    %vm93 = vcmp.ge.s32.totalorder %v85, 0
    %vm94 = vcmp.ge.s32.totalorder %v86, 0
    %vm95 = vcmp.ge.s32.totalorder %v87, 0
    %vm96 = vcmp.ge.s32.totalorder %v88, 0
    %vm97 = vcmp.ge.s32.totalorder %v89, 0
    %v98 = vxor.u32 %v82, 2147483647
    %v99 = vxor.u32 %v83, 2147483647
    %v100 = vxor.u32 %v84, 2147483647
    %v101 = vxor.u32 %v85, 2147483647
    %v102 = vxor.u32 %v86, 2147483647
    %v103 = vxor.u32 %v87, 2147483647
    %v104 = vxor.u32 %v88, 2147483647
    %v105 = vxor.u32 %v89, 2147483647
    %v106 = vsel %vm90, %v82, %v98
    %v107 = vsel %vm91, %v83, %v99
    %v108 = vsel %vm92, %v84, %v100
    %v109 = vsel %vm93, %v85, %v101
    %v110 = vsel %vm94, %v86, %v102
    %v111 = vsel %vm95, %v87, %v103
    %v112 = vsel %vm96, %v88, %v104
    %v113 = vsel %vm97, %v89, %v105
    %vm114 = vcmp.ge.s32.totalorder %v106, 0
    %vm115 = vcmp.ge.s32.totalorder %v107, 0
    %vm116 = vcmp.ge.s32.totalorder %v108, 0
    %vm117 = vcmp.ge.s32.totalorder %v109, 0
    %vm118 = vcmp.ge.s32.totalorder %v110, 0
    %vm119 = vcmp.ge.s32.totalorder %v111, 0
    %vm120 = vcmp.ge.s32.totalorder %v112, 0
    %vm121 = vcmp.ge.s32.totalorder %v113, 0
    %v122 = vsel %vm114, 1, 0
    %v123 = vsel %vm115, 1, 0
    %v124 = vsel %vm116, 1, 0
    %v125 = vsel %vm117, 1, 0
    %v126 = vsel %vm118, 1, 0
    %v127 = vsel %vm119, 1, 0
    %v128 = vsel %vm120, 1, 0
    %v129 = vsel %vm121, 1, 0
    %v130 = vcvt.s32.f32 %v122
    %v131 = vcvt.s32.f32 %v123
    %v132 = vcvt.s32.f32 %v124
    %v133 = vcvt.s32.f32 %v125
    %v134 = vcvt.s32.f32 %v126
    %v135 = vcvt.s32.f32 %v127
    %v136 = vcvt.s32.f32 %v128
    %v137 = vcvt.s32.f32 %v129
    %v138 = vsel %vm64, %v130, 0.0
    %v139 = vsel %vm64, %v131, 0.0
    %v140 = vadd.f32 %v138, %v139
    %v141 = vsel %vm64, %v132, 0.0
    %v142 = vadd.f32 %v140, %v141
    %v143 = vsel %vm64, %v133, 0.0
    %v144 = vadd.f32 %v142, %v143
    %v145 = vsel %vm64, %v134, 0.0
    %v146 = vadd.f32 %v144, %v145
    %v147 = vsel %vm64, %v135, 0.0
    %v148 = vadd.f32 %v146, %v147
    %v149 = vsel %vm64, %v136, 0.0
    %v150 = vadd.f32 %v148, %v149
    %v151 = vsel %vm64, %v137, 0.0
    %v152 = vadd.f32 %v150, %v151
    %153 = vadd.xlane.f32.xlu0 %v152
    %v154 = vpop.xlane.xlu0 %153
    %vm155 = vcmp.ge.f32.partialorder %v154, 32.0
    %v156 = vsel %vm155, 2147483648, 0
    %v157 = vor.u32 %v156, 1073741824
    %v158 = vxor.u32 %v157, 2147483648
    %vm159 = vcmp.ge.s32.totalorder %v106, %v158
    %vm160 = vcmp.ge.s32.totalorder %v107, %v158
    %vm161 = vcmp.ge.s32.totalorder %v108, %v158
    %vm162 = vcmp.ge.s32.totalorder %v109, %v158
    %vm163 = vcmp.ge.s32.totalorder %v110, %v158
    %vm164 = vcmp.ge.s32.totalorder %v111, %v158
    %vm165 = vcmp.ge.s32.totalorder %v112, %v158
    %vm166 = vcmp.ge.s32.totalorder %v113, %v158
    %v167 = vsel %vm159, 1, 0
    %v168 = vsel %vm160, 1, 0
    %v169 = vsel %vm161, 1, 0
    %v170 = vsel %vm162, 1, 0
    %v171 = vsel %vm163, 1, 0
    %v172 = vsel %vm164, 1, 0
    %v173 = vsel %vm165, 1, 0
    %v174 = vsel %vm166, 1, 0
    %v175 = vcvt.s32.f32 %v167
    %v176 = vcvt.s32.f32 %v168
    %v177 = vcvt.s32.f32 %v169
    %v178 = vcvt.s32.f32 %v170
    %v179 = vcvt.s32.f32 %v171
    %v180 = vcvt.s32.f32 %v172
    %v181 = vcvt.s32.f32 %v173
    %v182 = vcvt.s32.f32 %v174
    %v183 = vsel %vm64, %v175, 0.0
    %v184 = vsel %vm64, %v176, 0.0
    %v185 = vadd.f32 %v183, %v184
    %v186 = vsel %vm64, %v177, 0.0
    %v187 = vadd.f32 %v185, %v186
    %v188 = vsel %vm64, %v178, 0.0
    %v189 = vadd.f32 %v187, %v188
    %v190 = vsel %vm64, %v179, 0.0
    %v191 = vadd.f32 %v189, %v190
    %v192 = vsel %vm64, %v180, 0.0
    %v193 = vadd.f32 %v191, %v192
    %v194 = vsel %vm64, %v181, 0.0
    %v195 = vadd.f32 %v193, %v194
    %v196 = vsel %vm64, %v182, 0.0
    %v197 = vadd.f32 %v195, %v196
    %198 = vadd.xlane.f32.xlu0 %v197
    %v199 = vpop.xlane.xlu0 %198
    %vm200 = vcmp.ge.f32.partialorder %v199, 32.0
    %v201 = vsel %vm200, %v157, %v156
    %v202 = vor.u32 %v201, 536870912
    %v203 = vxor.u32 %v202, 2147483648
    %vm204 = vcmp.ge.s32.totalorder %v106, %v203
    %vm205 = vcmp.ge.s32.totalorder %v107, %v203
    %vm206 = vcmp.ge.s32.totalorder %v108, %v203
    %vm207 = vcmp.ge.s32.totalorder %v109, %v203
    %vm208 = vcmp.ge.s32.totalorder %v110, %v203
    %vm209 = vcmp.ge.s32.totalorder %v111, %v203
    %vm210 = vcmp.ge.s32.totalorder %v112, %v203
    %vm211 = vcmp.ge.s32.totalorder %v113, %v203
    %v212 = vsel %vm204, 1, 0
    %v213 = vsel %vm205, 1, 0
    %v214 = vsel %vm206, 1, 0
    %v215 = vsel %vm207, 1, 0
    %v216 = vsel %vm208, 1, 0
    %v217 = vsel %vm209, 1, 0
    %v218 = vsel %vm210, 1, 0
    %v219 = vsel %vm211, 1, 0
    %v220 = vcvt.s32.f32 %v212
    %v221 = vcvt.s32.f32 %v213
    %v222 = vcvt.s32.f32 %v214
    %v223 = vcvt.s32.f32 %v215
    %v224 = vcvt.s32.f32 %v216
    %v225 = vcvt.s32.f32 %v217
    %v226 = vcvt.s32.f32 %v218
    %v227 = vcvt.s32.f32 %v219
    %v228 = vsel %vm64, %v220, 0.0
    %v229 = vsel %vm64, %v221, 0.0
    %v230 = vadd.f32 %v228, %v229
    %v231 = vsel %vm64, %v222, 0.0
    %v232 = vadd.f32 %v230, %v231
    %v233 = vsel %vm64, %v223, 0.0
    %v234 = vadd.f32 %v232, %v233
    %v235 = vsel %vm64, %v224, 0.0
    %v236 = vadd.f32 %v234, %v235
    %v237 = vsel %vm64, %v225, 0.0
    %v238 = vadd.f32 %v236, %v237
    %v239 = vsel %vm64, %v226, 0.0
    %v240 = vadd.f32 %v238, %v239
    %v241 = vsel %vm64, %v227, 0.0
    %v242 = vadd.f32 %v240, %v241
    %243 = vadd.xlane.f32.xlu0 %v242
    %v244 = vpop.xlane.xlu0 %243
    %vm245 = vcmp.ge.f32.partialorder %v244, 32.0
    %v246 = vsel %vm245, %v202, %v201
    %v247 = vor.u32 %v246, 268435456
    %v248 = vxor.u32 %v247, 2147483648
    %vm249 = vcmp.ge.s32.totalorder %v106, %v248
    %vm250 = vcmp.ge.s32.totalorder %v107, %v248
    %vm251 = vcmp.ge.s32.totalorder %v108, %v248
    %vm252 = vcmp.ge.s32.totalorder %v109, %v248
    %vm253 = vcmp.ge.s32.totalorder %v110, %v248
    %vm254 = vcmp.ge.s32.totalorder %v111, %v248
    %vm255 = vcmp.ge.s32.totalorder %v112, %v248
    %vm256 = vcmp.ge.s32.totalorder %v113, %v248
    %v257 = vsel %vm249, 1, 0
    %v258 = vsel %vm250, 1, 0
    %v259 = vsel %vm251, 1, 0
    %v260 = vsel %vm252, 1, 0
    %v261 = vsel %vm253, 1, 0
    %v262 = vsel %vm254, 1, 0
    %v263 = vsel %vm255, 1, 0
    %v264 = vsel %vm256, 1, 0
    %v265 = vcvt.s32.f32 %v257
    %v266 = vcvt.s32.f32 %v258
    %v267 = vcvt.s32.f32 %v259
    %v268 = vcvt.s32.f32 %v260
    %v269 = vcvt.s32.f32 %v261
    %v270 = vcvt.s32.f32 %v262
    %v271 = vcvt.s32.f32 %v263
    %v272 = vcvt.s32.f32 %v264
    %v273 = vsel %vm64, %v265, 0.0
    %v274 = vsel %vm64, %v266, 0.0
    %v275 = vadd.f32 %v273, %v274
    %v276 = vsel %vm64, %v267, 0.0
    %v277 = vadd.f32 %v275, %v276
    %v278 = vsel %vm64, %v268, 0.0
    %v279 = vadd.f32 %v277, %v278
    %v280 = vsel %vm64, %v269, 0.0
    %v281 = vadd.f32 %v279, %v280
    %v282 = vsel %vm64, %v270, 0.0
    %v283 = vadd.f32 %v281, %v282
    %v284 = vsel %vm64, %v271, 0.0
    %v285 = vadd.f32 %v283, %v284
    %v286 = vsel %vm64, %v272, 0.0
    %v287 = vadd.f32 %v285, %v286
    %288 = vadd.xlane.f32.xlu0 %v287
    %v289 = vpop.xlane.xlu0 %288
    %vm290 = vcmp.ge.f32.partialorder %v289, 32.0
    %v291 = vsel %vm290, %v247, %v246
    %v292 = vor.u32 %v291, 134217728
    %v293 = vxor.u32 %v292, 2147483648
    %vm294 = vcmp.ge.s32.totalorder %v106, %v293
    %vm295 = vcmp.ge.s32.totalorder %v107, %v293
    %vm296 = vcmp.ge.s32.totalorder %v108, %v293
    %vm297 = vcmp.ge.s32.totalorder %v109, %v293
    %vm298 = vcmp.ge.s32.totalorder %v110, %v293
    %vm299 = vcmp.ge.s32.totalorder %v111, %v293
    %vm300 = vcmp.ge.s32.totalorder %v112, %v293
    %vm301 = vcmp.ge.s32.totalorder %v113, %v293
    %v302 = vsel %vm294, 1, 0
    %v303 = vsel %vm295, 1, 0
    %v304 = vsel %vm296, 1, 0
    %v305 = vsel %vm297, 1, 0
    %v306 = vsel %vm298, 1, 0
    %v307 = vsel %vm299, 1, 0
    %v308 = vsel %vm300, 1, 0
    %v309 = vsel %vm301, 1, 0
    %v310 = vcvt.s32.f32 %v302
    %v311 = vcvt.s32.f32 %v303
    %v312 = vcvt.s32.f32 %v304
    %v313 = vcvt.s32.f32 %v305
    %v314 = vcvt.s32.f32 %v306
    %v315 = vcvt.s32.f32 %v307
    %v316 = vcvt.s32.f32 %v308
    %v317 = vcvt.s32.f32 %v309
    %v318 = vsel %vm64, %v310, 0.0
    %v319 = vsel %vm64, %v311, 0.0
    %v320 = vadd.f32 %v318, %v319
    %v321 = vsel %vm64, %v312, 0.0
    %v322 = vadd.f32 %v320, %v321
    %v323 = vsel %vm64, %v313, 0.0
    %v324 = vadd.f32 %v322, %v323
    %v325 = vsel %vm64, %v314, 0.0
    %v326 = vadd.f32 %v324, %v325
    %v327 = vsel %vm64, %v315, 0.0
    %v328 = vadd.f32 %v326, %v327
    %v329 = vsel %vm64, %v316, 0.0
    %v330 = vadd.f32 %v328, %v329
    %v331 = vsel %vm64, %v317, 0.0
    %v332 = vadd.f32 %v330, %v331
    %333 = vadd.xlane.f32.xlu0 %v332
    %v334 = vpop.xlane.xlu0 %333
    %vm335 = vcmp.ge.f32.partialorder %v334, 32.0
    %v336 = vsel %vm335, %v292, %v291
    %v337 = vor.u32 %v336, 67108864
    %v338 = vxor.u32 %v337, 2147483648
    %vm339 = vcmp.ge.s32.totalorder %v106, %v338
    %vm340 = vcmp.ge.s32.totalorder %v107, %v338
    %vm341 = vcmp.ge.s32.totalorder %v108, %v338
    %vm342 = vcmp.ge.s32.totalorder %v109, %v338
    %vm343 = vcmp.ge.s32.totalorder %v110, %v338
    %vm344 = vcmp.ge.s32.totalorder %v111, %v338
    %vm345 = vcmp.ge.s32.totalorder %v112, %v338
    %vm346 = vcmp.ge.s32.totalorder %v113, %v338
    %v347 = vsel %vm339, 1, 0
    %v348 = vsel %vm340, 1, 0
    %v349 = vsel %vm341, 1, 0
    %v350 = vsel %vm342, 1, 0
    %v351 = vsel %vm343, 1, 0
    %v352 = vsel %vm344, 1, 0
    %v353 = vsel %vm345, 1, 0
    %v354 = vsel %vm346, 1, 0
    %v355 = vcvt.s32.f32 %v347
    %v356 = vcvt.s32.f32 %v348
    %v357 = vcvt.s32.f32 %v349
    %v358 = vcvt.s32.f32 %v350
    %v359 = vcvt.s32.f32 %v351
    %v360 = vcvt.s32.f32 %v352
    %v361 = vcvt.s32.f32 %v353
    %v362 = vcvt.s32.f32 %v354
    %v363 = vsel %vm64, %v355, 0.0
    %v364 = vsel %vm64, %v356, 0.0
    %v365 = vadd.f32 %v363, %v364
    %v366 = vsel %vm64, %v357, 0.0
    %v367 = vadd.f32 %v365, %v366
    %v368 = vsel %vm64, %v358, 0.0
    %v369 = vadd.f32 %v367, %v368
    %v370 = vsel %vm64, %v359, 0.0
    %v371 = vadd.f32 %v369, %v370
    %v372 = vsel %vm64, %v360, 0.0
    %v373 = vadd.f32 %v371, %v372
    %v374 = vsel %vm64, %v361, 0.0
    %v375 = vadd.f32 %v373, %v374
    %v376 = vsel %vm64, %v362, 0.0
    %v377 = vadd.f32 %v375, %v376
    %378 = vadd.xlane.f32.xlu0 %v377
    %v379 = vpop.xlane.xlu0 %378
    %vm380 = vcmp.ge.f32.partialorder %v379, 32.0
    %v381 = vsel %vm380, %v337, %v336
    %v382 = vor.u32 %v381, 33554432
    %v383 = vxor.u32 %v382, 2147483648
    %vm384 = vcmp.ge.s32.totalorder %v106, %v383
    %vm385 = vcmp.ge.s32.totalorder %v107, %v383
    %vm386 = vcmp.ge.s32.totalorder %v108, %v383
    %vm387 = vcmp.ge.s32.totalorder %v109, %v383
    %vm388 = vcmp.ge.s32.totalorder %v110, %v383
    %vm389 = vcmp.ge.s32.totalorder %v111, %v383
    %vm390 = vcmp.ge.s32.totalorder %v112, %v383
    %vm391 = vcmp.ge.s32.totalorder %v113, %v383
    %v392 = vsel %vm384, 1, 0
    %v393 = vsel %vm385, 1, 0
    %v394 = vsel %vm386, 1, 0
    %v395 = vsel %vm387, 1, 0
    %v396 = vsel %vm388, 1, 0
    %v397 = vsel %vm389, 1, 0
    %v398 = vsel %vm390, 1, 0
    %v399 = vsel %vm391, 1, 0
    %v400 = vcvt.s32.f32 %v392
    %v401 = vcvt.s32.f32 %v393
    %v402 = vcvt.s32.f32 %v394
    %v403 = vcvt.s32.f32 %v395
    %v404 = vcvt.s32.f32 %v396
    %v405 = vcvt.s32.f32 %v397
    %v406 = vcvt.s32.f32 %v398
    %v407 = vcvt.s32.f32 %v399
    %v408 = vsel %vm64, %v400, 0.0
    %v409 = vsel %vm64, %v401, 0.0
    %v410 = vadd.f32 %v408, %v409
    %v411 = vsel %vm64, %v402, 0.0
    %v412 = vadd.f32 %v410, %v411
    %v413 = vsel %vm64, %v403, 0.0
    %v414 = vadd.f32 %v412, %v413
    %v415 = vsel %vm64, %v404, 0.0
    %v416 = vadd.f32 %v414, %v415
    %v417 = vsel %vm64, %v405, 0.0
    %v418 = vadd.f32 %v416, %v417
    %v419 = vsel %vm64, %v406, 0.0
    %v420 = vadd.f32 %v418, %v419
    %v421 = vsel %vm64, %v407, 0.0
    %v422 = vadd.f32 %v420, %v421
    %423 = vadd.xlane.f32.xlu0 %v422
    %v424 = vpop.xlane.xlu0 %423
    %vm425 = vcmp.ge.f32.partialorder %v424, 32.0
    %v426 = vsel %vm425, %v382, %v381
    %v427 = vor.u32 %v426, 16777216
    %v428 = vxor.u32 %v427, 2147483648
    %vm429 = vcmp.ge.s32.totalorder %v106, %v428
    %vm430 = vcmp.ge.s32.totalorder %v107, %v428
    %vm431 = vcmp.ge.s32.totalorder %v108, %v428
    %vm432 = vcmp.ge.s32.totalorder %v109, %v428
    %vm433 = vcmp.ge.s32.totalorder %v110, %v428
    %vm434 = vcmp.ge.s32.totalorder %v111, %v428
    %vm435 = vcmp.ge.s32.totalorder %v112, %v428
    %vm436 = vcmp.ge.s32.totalorder %v113, %v428
    %v437 = vsel %vm429, 1, 0
    %v438 = vsel %vm430, 1, 0
    %v439 = vsel %vm431, 1, 0
    %v440 = vsel %vm432, 1, 0
    %v441 = vsel %vm433, 1, 0
    %v442 = vsel %vm434, 1, 0
    %v443 = vsel %vm435, 1, 0
    %v444 = vsel %vm436, 1, 0
    %v445 = vcvt.s32.f32 %v437
    %v446 = vcvt.s32.f32 %v438
    %v447 = vcvt.s32.f32 %v439
    %v448 = vcvt.s32.f32 %v440
    %v449 = vcvt.s32.f32 %v441
    %v450 = vcvt.s32.f32 %v442
    %v451 = vcvt.s32.f32 %v443
    %v452 = vcvt.s32.f32 %v444
    %v453 = vsel %vm64, %v445, 0.0
    %v454 = vsel %vm64, %v446, 0.0
    %v455 = vadd.f32 %v453, %v454
    %v456 = vsel %vm64, %v447, 0.0
    %v457 = vadd.f32 %v455, %v456
    %v458 = vsel %vm64, %v448, 0.0
    %v459 = vadd.f32 %v457, %v458
    %v460 = vsel %vm64, %v449, 0.0
    %v461 = vadd.f32 %v459, %v460
    %v462 = vsel %vm64, %v450, 0.0
    %v463 = vadd.f32 %v461, %v462
    %v464 = vsel %vm64, %v451, 0.0
    %v465 = vadd.f32 %v463, %v464
    %v466 = vsel %vm64, %v452, 0.0
    %v467 = vadd.f32 %v465, %v466
    %468 = vadd.xlane.f32.xlu0 %v467
    %v469 = vpop.xlane.xlu0 %468
    %vm470 = vcmp.ge.f32.partialorder %v469, 32.0
    %v471 = vsel %vm470, %v427, %v426
    %v472 = vor.u32 %v471, 8388608
    %v473 = vxor.u32 %v472, 2147483648
    %vm474 = vcmp.ge.s32.totalorder %v106, %v473
    %vm475 = vcmp.ge.s32.totalorder %v107, %v473
    %vm476 = vcmp.ge.s32.totalorder %v108, %v473
    %vm477 = vcmp.ge.s32.totalorder %v109, %v473
    %vm478 = vcmp.ge.s32.totalorder %v110, %v473
    %vm479 = vcmp.ge.s32.totalorder %v111, %v473
    %vm480 = vcmp.ge.s32.totalorder %v112, %v473
    %vm481 = vcmp.ge.s32.totalorder %v113, %v473
    %v482 = vsel %vm474, 1, 0
    %v483 = vsel %vm475, 1, 0
    %v484 = vsel %vm476, 1, 0
    %v485 = vsel %vm477, 1, 0
    %v486 = vsel %vm478, 1, 0
    %v487 = vsel %vm479, 1, 0
    %v488 = vsel %vm480, 1, 0
    %v489 = vsel %vm481, 1, 0
    %v490 = vcvt.s32.f32 %v482
    %v491 = vcvt.s32.f32 %v483
    %v492 = vcvt.s32.f32 %v484
    %v493 = vcvt.s32.f32 %v485
    %v494 = vcvt.s32.f32 %v486
    %v495 = vcvt.s32.f32 %v487
    %v496 = vcvt.s32.f32 %v488
    %v497 = vcvt.s32.f32 %v489
    %v498 = vsel %vm64, %v490, 0.0
    %v499 = vsel %vm64, %v491, 0.0
    %v500 = vadd.f32 %v498, %v499
    %v501 = vsel %vm64, %v492, 0.0
    %v502 = vadd.f32 %v500, %v501
    %v503 = vsel %vm64, %v493, 0.0
    %v504 = vadd.f32 %v502, %v503
    %v505 = vsel %vm64, %v494, 0.0
    %v506 = vadd.f32 %v504, %v505
    %v507 = vsel %vm64, %v495, 0.0
    %v508 = vadd.f32 %v506, %v507
    %v509 = vsel %vm64, %v496, 0.0
    %v510 = vadd.f32 %v508, %v509
    %v511 = vsel %vm64, %v497, 0.0
    %v512 = vadd.f32 %v510, %v511
    %513 = vadd.xlane.f32.xlu0 %v512
    %v514 = vpop.xlane.xlu0 %513
    %vm515 = vcmp.ge.f32.partialorder %v514, 32.0
    %v516 = vsel %vm515, %v472, %v471
    %v517 = vor.u32 %v516, 4194304
    %v518 = vxor.u32 %v517, 2147483648
    %vm519 = vcmp.ge.s32.totalorder %v106, %v518
    %vm520 = vcmp.ge.s32.totalorder %v107, %v518
    %vm521 = vcmp.ge.s32.totalorder %v108, %v518
    %vm522 = vcmp.ge.s32.totalorder %v109, %v518
    %vm523 = vcmp.ge.s32.totalorder %v110, %v518
    %vm524 = vcmp.ge.s32.totalorder %v111, %v518
    %vm525 = vcmp.ge.s32.totalorder %v112, %v518
    %vm526 = vcmp.ge.s32.totalorder %v113, %v518
    %v527 = vsel %vm519, 1, 0
    %v528 = vsel %vm520, 1, 0
    %v529 = vsel %vm521, 1, 0
    %v530 = vsel %vm522, 1, 0
    %v531 = vsel %vm523, 1, 0
    %v532 = vsel %vm524, 1, 0
    %v533 = vsel %vm525, 1, 0
    %v534 = vsel %vm526, 1, 0
    %v535 = vcvt.s32.f32 %v527
    %v536 = vcvt.s32.f32 %v528
    %v537 = vcvt.s32.f32 %v529
    %v538 = vcvt.s32.f32 %v530
    %v539 = vcvt.s32.f32 %v531
    %v540 = vcvt.s32.f32 %v532
    %v541 = vcvt.s32.f32 %v533
    %v542 = vcvt.s32.f32 %v534
    %v543 = vsel %vm64, %v535, 0.0
    %v544 = vsel %vm64, %v536, 0.0
    %v545 = vadd.f32 %v543, %v544
    %v546 = vsel %vm64, %v537, 0.0
    %v547 = vadd.f32 %v545, %v546
    %v548 = vsel %vm64, %v538, 0.0
    %v549 = vadd.f32 %v547, %v548
    %v550 = vsel %vm64, %v539, 0.0
    %v551 = vadd.f32 %v549, %v550
    %v552 = vsel %vm64, %v540, 0.0
    %v553 = vadd.f32 %v551, %v552
    %v554 = vsel %vm64, %v541, 0.0
    %v555 = vadd.f32 %v553, %v554
    %v556 = vsel %vm64, %v542, 0.0
    %v557 = vadd.f32 %v555, %v556
    %558 = vadd.xlane.f32.xlu0 %v557
    %v559 = vpop.xlane.xlu0 %558
    %vm560 = vcmp.ge.f32.partialorder %v559, 32.0
    %v561 = vsel %vm560, %v517, %v516
    %v562 = vor.u32 %v561, 2097152
    %v563 = vxor.u32 %v562, 2147483648
    %vm564 = vcmp.ge.s32.totalorder %v106, %v563
    %vm565 = vcmp.ge.s32.totalorder %v107, %v563
    %vm566 = vcmp.ge.s32.totalorder %v108, %v563
    %vm567 = vcmp.ge.s32.totalorder %v109, %v563
    %vm568 = vcmp.ge.s32.totalorder %v110, %v563
    %vm569 = vcmp.ge.s32.totalorder %v111, %v563
    %vm570 = vcmp.ge.s32.totalorder %v112, %v563
    %vm571 = vcmp.ge.s32.totalorder %v113, %v563
    %v572 = vsel %vm564, 1, 0
    %v573 = vsel %vm565, 1, 0
    %v574 = vsel %vm566, 1, 0
    %v575 = vsel %vm567, 1, 0
    %v576 = vsel %vm568, 1, 0
    %v577 = vsel %vm569, 1, 0
    %v578 = vsel %vm570, 1, 0
    %v579 = vsel %vm571, 1, 0
    %v580 = vcvt.s32.f32 %v572
    %v581 = vcvt.s32.f32 %v573
    %v582 = vcvt.s32.f32 %v574
    %v583 = vcvt.s32.f32 %v575
    %v584 = vcvt.s32.f32 %v576
    %v585 = vcvt.s32.f32 %v577
    %v586 = vcvt.s32.f32 %v578
    %v587 = vcvt.s32.f32 %v579
    %v588 = vsel %vm64, %v580, 0.0
    %v589 = vsel %vm64, %v581, 0.0
    %v590 = vadd.f32 %v588, %v589
    %v591 = vsel %vm64, %v582, 0.0
    %v592 = vadd.f32 %v590, %v591
    %v593 = vsel %vm64, %v583, 0.0
    %v594 = vadd.f32 %v592, %v593
    %v595 = vsel %vm64, %v584, 0.0
    %v596 = vadd.f32 %v594, %v595
    %v597 = vsel %vm64, %v585, 0.0
    %v598 = vadd.f32 %v596, %v597
    %v599 = vsel %vm64, %v586, 0.0
    %v600 = vadd.f32 %v598, %v599
    %v601 = vsel %vm64, %v587, 0.0
    %v602 = vadd.f32 %v600, %v601
    %603 = vadd.xlane.f32.xlu0 %v602
    %v604 = vpop.xlane.xlu0 %603
    %vm605 = vcmp.ge.f32.partialorder %v604, 32.0
    %v606 = vsel %vm605, %v562, %v561
    %v607 = vor.u32 %v606, 1048576
    %v608 = vxor.u32 %v607, 2147483648
    %vm609 = vcmp.ge.s32.totalorder %v106, %v608
    %vm610 = vcmp.ge.s32.totalorder %v107, %v608
    %vm611 = vcmp.ge.s32.totalorder %v108, %v608
    %vm612 = vcmp.ge.s32.totalorder %v109, %v608
    %vm613 = vcmp.ge.s32.totalorder %v110, %v608
    %vm614 = vcmp.ge.s32.totalorder %v111, %v608
    %vm615 = vcmp.ge.s32.totalorder %v112, %v608
    %vm616 = vcmp.ge.s32.totalorder %v113, %v608
    %v617 = vsel %vm609, 1, 0
    %v618 = vsel %vm610, 1, 0
    %v619 = vsel %vm611, 1, 0
    %v620 = vsel %vm612, 1, 0
    %v621 = vsel %vm613, 1, 0
    %v622 = vsel %vm614, 1, 0
    %v623 = vsel %vm615, 1, 0
    %v624 = vsel %vm616, 1, 0
    %v625 = vcvt.s32.f32 %v617
    %v626 = vcvt.s32.f32 %v618
    %v627 = vcvt.s32.f32 %v619
    %v628 = vcvt.s32.f32 %v620
    %v629 = vcvt.s32.f32 %v621
    %v630 = vcvt.s32.f32 %v622
    %v631 = vcvt.s32.f32 %v623
    %v632 = vcvt.s32.f32 %v624
    %v633 = vsel %vm64, %v625, 0.0
    %v634 = vsel %vm64, %v626, 0.0
    %v635 = vadd.f32 %v633, %v634
    %v636 = vsel %vm64, %v627, 0.0
    %v637 = vadd.f32 %v635, %v636
    %v638 = vsel %vm64, %v628, 0.0
    %v639 = vadd.f32 %v637, %v638
    %v640 = vsel %vm64, %v629, 0.0
    %v641 = vadd.f32 %v639, %v640
    %v642 = vsel %vm64, %v630, 0.0
    %v643 = vadd.f32 %v641, %v642
    %v644 = vsel %vm64, %v631, 0.0
    %v645 = vadd.f32 %v643, %v644
    %v646 = vsel %vm64, %v632, 0.0
    %v647 = vadd.f32 %v645, %v646
    %648 = vadd.xlane.f32.xlu0 %v647
    %v649 = vpop.xlane.xlu0 %648
    %vm650 = vcmp.ge.f32.partialorder %v649, 32.0
    %v651 = vsel %vm650, %v607, %v606
    %v652 = vor.u32 %v651, 524288
    %v653 = vxor.u32 %v652, 2147483648
    %vm654 = vcmp.ge.s32.totalorder %v106, %v653
    %vm655 = vcmp.ge.s32.totalorder %v107, %v653
    %vm656 = vcmp.ge.s32.totalorder %v108, %v653
    %vm657 = vcmp.ge.s32.totalorder %v109, %v653
    %vm658 = vcmp.ge.s32.totalorder %v110, %v653
    %vm659 = vcmp.ge.s32.totalorder %v111, %v653
    %vm660 = vcmp.ge.s32.totalorder %v112, %v653
    %vm661 = vcmp.ge.s32.totalorder %v113, %v653
    %v662 = vsel %vm654, 1, 0
    %v663 = vsel %vm655, 1, 0
    %v664 = vsel %vm656, 1, 0
    %v665 = vsel %vm657, 1, 0
    %v666 = vsel %vm658, 1, 0
    %v667 = vsel %vm659, 1, 0
    %v668 = vsel %vm660, 1, 0
    %v669 = vsel %vm661, 1, 0
    %v670 = vcvt.s32.f32 %v662
    %v671 = vcvt.s32.f32 %v663
    %v672 = vcvt.s32.f32 %v664
    %v673 = vcvt.s32.f32 %v665
    %v674 = vcvt.s32.f32 %v666
    %v675 = vcvt.s32.f32 %v667
    %v676 = vcvt.s32.f32 %v668
    %v677 = vcvt.s32.f32 %v669
    %v678 = vsel %vm64, %v670, 0.0
    %v679 = vsel %vm64, %v671, 0.0
    %v680 = vadd.f32 %v678, %v679
    %v681 = vsel %vm64, %v672, 0.0
    %v682 = vadd.f32 %v680, %v681
    %v683 = vsel %vm64, %v673, 0.0
    %v684 = vadd.f32 %v682, %v683
    %v685 = vsel %vm64, %v674, 0.0
    %v686 = vadd.f32 %v684, %v685
    %v687 = vsel %vm64, %v675, 0.0
    %v688 = vadd.f32 %v686, %v687
    %v689 = vsel %vm64, %v676, 0.0
    %v690 = vadd.f32 %v688, %v689
    %v691 = vsel %vm64, %v677, 0.0
    %v692 = vadd.f32 %v690, %v691
    %693 = vadd.xlane.f32.xlu0 %v692
    %v694 = vpop.xlane.xlu0 %693
    %vm695 = vcmp.ge.f32.partialorder %v694, 32.0
    %v696 = vsel %vm695, %v652, %v651
    %v697 = vor.u32 %v696, 262144
    %v698 = vxor.u32 %v697, 2147483648
    %vm699 = vcmp.ge.s32.totalorder %v106, %v698
    %vm700 = vcmp.ge.s32.totalorder %v107, %v698
    %vm701 = vcmp.ge.s32.totalorder %v108, %v698
    %vm702 = vcmp.ge.s32.totalorder %v109, %v698
    %vm703 = vcmp.ge.s32.totalorder %v110, %v698
    %vm704 = vcmp.ge.s32.totalorder %v111, %v698
    %vm705 = vcmp.ge.s32.totalorder %v112, %v698
    %vm706 = vcmp.ge.s32.totalorder %v113, %v698
    %v707 = vsel %vm699, 1, 0
    %v708 = vsel %vm700, 1, 0
    %v709 = vsel %vm701, 1, 0
    %v710 = vsel %vm702, 1, 0
    %v711 = vsel %vm703, 1, 0
    %v712 = vsel %vm704, 1, 0
    %v713 = vsel %vm705, 1, 0
    %v714 = vsel %vm706, 1, 0
    %v715 = vcvt.s32.f32 %v707
    %v716 = vcvt.s32.f32 %v708
    %v717 = vcvt.s32.f32 %v709
    %v718 = vcvt.s32.f32 %v710
    %v719 = vcvt.s32.f32 %v711
    %v720 = vcvt.s32.f32 %v712
    %v721 = vcvt.s32.f32 %v713
    %v722 = vcvt.s32.f32 %v714
    %v723 = vsel %vm64, %v715, 0.0
    %v724 = vsel %vm64, %v716, 0.0
    %v725 = vadd.f32 %v723, %v724
    %v726 = vsel %vm64, %v717, 0.0
    %v727 = vadd.f32 %v725, %v726
    %v728 = vsel %vm64, %v718, 0.0
    %v729 = vadd.f32 %v727, %v728
    %v730 = vsel %vm64, %v719, 0.0
    %v731 = vadd.f32 %v729, %v730
    %v732 = vsel %vm64, %v720, 0.0
    %v733 = vadd.f32 %v731, %v732
    %v734 = vsel %vm64, %v721, 0.0
    %v735 = vadd.f32 %v733, %v734
    %v736 = vsel %vm64, %v722, 0.0
    %v737 = vadd.f32 %v735, %v736
    %738 = vadd.xlane.f32.xlu0 %v737
    %v739 = vpop.xlane.xlu0 %738
    %vm740 = vcmp.ge.f32.partialorder %v739, 32.0
    %v741 = vsel %vm740, %v697, %v696
    %v742 = vor.u32 %v741, 131072
    %v743 = vxor.u32 %v742, 2147483648
    %vm744 = vcmp.ge.s32.totalorder %v106, %v743
    %vm745 = vcmp.ge.s32.totalorder %v107, %v743
    %vm746 = vcmp.ge.s32.totalorder %v108, %v743
    %vm747 = vcmp.ge.s32.totalorder %v109, %v743
    %vm748 = vcmp.ge.s32.totalorder %v110, %v743
    %vm749 = vcmp.ge.s32.totalorder %v111, %v743
    %vm750 = vcmp.ge.s32.totalorder %v112, %v743
    %vm751 = vcmp.ge.s32.totalorder %v113, %v743
    %v752 = vsel %vm744, 1, 0
    %v753 = vsel %vm745, 1, 0
    %v754 = vsel %vm746, 1, 0
    %v755 = vsel %vm747, 1, 0
    %v756 = vsel %vm748, 1, 0
    %v757 = vsel %vm749, 1, 0
    %v758 = vsel %vm750, 1, 0
    %v759 = vsel %vm751, 1, 0
    %v760 = vcvt.s32.f32 %v752
    %v761 = vcvt.s32.f32 %v753
    %v762 = vcvt.s32.f32 %v754
    %v763 = vcvt.s32.f32 %v755
    %v764 = vcvt.s32.f32 %v756
    %v765 = vcvt.s32.f32 %v757
    %v766 = vcvt.s32.f32 %v758
    %v767 = vcvt.s32.f32 %v759
    %v768 = vsel %vm64, %v760, 0.0
    %v769 = vsel %vm64, %v761, 0.0
    %v770 = vadd.f32 %v768, %v769
    %v771 = vsel %vm64, %v762, 0.0
    %v772 = vadd.f32 %v770, %v771
    %v773 = vsel %vm64, %v763, 0.0
    %v774 = vadd.f32 %v772, %v773
    %v775 = vsel %vm64, %v764, 0.0
    %v776 = vadd.f32 %v774, %v775
    %v777 = vsel %vm64, %v765, 0.0
    %v778 = vadd.f32 %v776, %v777
    %v779 = vsel %vm64, %v766, 0.0
    %v780 = vadd.f32 %v778, %v779
    %v781 = vsel %vm64, %v767, 0.0
    %v782 = vadd.f32 %v780, %v781
    %783 = vadd.xlane.f32.xlu0 %v782
    %v784 = vpop.xlane.xlu0 %783
    %vm785 = vcmp.ge.f32.partialorder %v784, 32.0
    %v786 = vsel %vm785, %v742, %v741
    %v787 = vor.u32 %v786, 65536
    %v788 = vxor.u32 %v787, 2147483648
    %vm789 = vcmp.ge.s32.totalorder %v106, %v788
    %vm790 = vcmp.ge.s32.totalorder %v107, %v788
    %vm791 = vcmp.ge.s32.totalorder %v108, %v788
    %vm792 = vcmp.ge.s32.totalorder %v109, %v788
    %vm793 = vcmp.ge.s32.totalorder %v110, %v788
    %vm794 = vcmp.ge.s32.totalorder %v111, %v788
    %vm795 = vcmp.ge.s32.totalorder %v112, %v788
    %vm796 = vcmp.ge.s32.totalorder %v113, %v788
    %v797 = vsel %vm789, 1, 0
    %v798 = vsel %vm790, 1, 0
    %v799 = vsel %vm791, 1, 0
    %v800 = vsel %vm792, 1, 0
    %v801 = vsel %vm793, 1, 0
    %v802 = vsel %vm794, 1, 0
    %v803 = vsel %vm795, 1, 0
    %v804 = vsel %vm796, 1, 0
    %v805 = vcvt.s32.f32 %v797
    %v806 = vcvt.s32.f32 %v798
    %v807 = vcvt.s32.f32 %v799
    %v808 = vcvt.s32.f32 %v800
    %v809 = vcvt.s32.f32 %v801
    %v810 = vcvt.s32.f32 %v802
    %v811 = vcvt.s32.f32 %v803
    %v812 = vcvt.s32.f32 %v804
    %v813 = vsel %vm64, %v805, 0.0
    %v814 = vsel %vm64, %v806, 0.0
    %v815 = vadd.f32 %v813, %v814
    %v816 = vsel %vm64, %v807, 0.0
    %v817 = vadd.f32 %v815, %v816
    %v818 = vsel %vm64, %v808, 0.0
    %v819 = vadd.f32 %v817, %v818
    %v820 = vsel %vm64, %v809, 0.0
    %v821 = vadd.f32 %v819, %v820
    %v822 = vsel %vm64, %v810, 0.0
    %v823 = vadd.f32 %v821, %v822
    %v824 = vsel %vm64, %v811, 0.0
    %v825 = vadd.f32 %v823, %v824
    %v826 = vsel %vm64, %v812, 0.0
    %v827 = vadd.f32 %v825, %v826
    %828 = vadd.xlane.f32.xlu0 %v827
    %v829 = vpop.xlane.xlu0 %828
    %vm830 = vcmp.ge.f32.partialorder %v829, 32.0
    %v831 = vsel %vm830, %v787, %v786
    %v832 = vor.u32 %v831, 32768
    %v833 = vxor.u32 %v832, 2147483648
    %vm834 = vcmp.ge.s32.totalorder %v106, %v833
    %vm835 = vcmp.ge.s32.totalorder %v107, %v833
    %vm836 = vcmp.ge.s32.totalorder %v108, %v833
    %vm837 = vcmp.ge.s32.totalorder %v109, %v833
    %vm838 = vcmp.ge.s32.totalorder %v110, %v833
    %vm839 = vcmp.ge.s32.totalorder %v111, %v833
    %vm840 = vcmp.ge.s32.totalorder %v112, %v833
    %vm841 = vcmp.ge.s32.totalorder %v113, %v833
    %v842 = vsel %vm834, 1, 0
    %v843 = vsel %vm835, 1, 0
    %v844 = vsel %vm836, 1, 0
    %v845 = vsel %vm837, 1, 0
    %v846 = vsel %vm838, 1, 0
    %v847 = vsel %vm839, 1, 0
    %v848 = vsel %vm840, 1, 0
    %v849 = vsel %vm841, 1, 0
    %v850 = vcvt.s32.f32 %v842
    %v851 = vcvt.s32.f32 %v843
    %v852 = vcvt.s32.f32 %v844
    %v853 = vcvt.s32.f32 %v845
    %v854 = vcvt.s32.f32 %v846
    %v855 = vcvt.s32.f32 %v847
    %v856 = vcvt.s32.f32 %v848
    %v857 = vcvt.s32.f32 %v849
    %v858 = vsel %vm64, %v850, 0.0
    %v859 = vsel %vm64, %v851, 0.0
    %v860 = vadd.f32 %v858, %v859
    %v861 = vsel %vm64, %v852, 0.0
    %v862 = vadd.f32 %v860, %v861
    %v863 = vsel %vm64, %v853, 0.0
    %v864 = vadd.f32 %v862, %v863
    %v865 = vsel %vm64, %v854, 0.0
    %v866 = vadd.f32 %v864, %v865
    %v867 = vsel %vm64, %v855, 0.0
    %v868 = vadd.f32 %v866, %v867
    %v869 = vsel %vm64, %v856, 0.0
    %v870 = vadd.f32 %v868, %v869
    %v871 = vsel %vm64, %v857, 0.0
    %v872 = vadd.f32 %v870, %v871
    %873 = vadd.xlane.f32.xlu0 %v872
    %v874 = vpop.xlane.xlu0 %873
    %vm875 = vcmp.ge.f32.partialorder %v874, 32.0
    %v876 = vsel %vm875, %v832, %v831
    %v877 = vor.u32 %v876, 16384
    %v878 = vxor.u32 %v877, 2147483648
    %vm879 = vcmp.ge.s32.totalorder %v106, %v878
    %vm880 = vcmp.ge.s32.totalorder %v107, %v878
    %vm881 = vcmp.ge.s32.totalorder %v108, %v878
    %vm882 = vcmp.ge.s32.totalorder %v109, %v878
    %vm883 = vcmp.ge.s32.totalorder %v110, %v878
    %vm884 = vcmp.ge.s32.totalorder %v111, %v878
    %vm885 = vcmp.ge.s32.totalorder %v112, %v878
    %vm886 = vcmp.ge.s32.totalorder %v113, %v878
    %v887 = vsel %vm879, 1, 0
    %v888 = vsel %vm880, 1, 0
    %v889 = vsel %vm881, 1, 0
    %v890 = vsel %vm882, 1, 0
    %v891 = vsel %vm883, 1, 0
    %v892 = vsel %vm884, 1, 0
    %v893 = vsel %vm885, 1, 0
    %v894 = vsel %vm886, 1, 0
    %v895 = vcvt.s32.f32 %v887
    %v896 = vcvt.s32.f32 %v888
    %v897 = vcvt.s32.f32 %v889
    %v898 = vcvt.s32.f32 %v890
    %v899 = vcvt.s32.f32 %v891
    %v900 = vcvt.s32.f32 %v892
    %v901 = vcvt.s32.f32 %v893
    %v902 = vcvt.s32.f32 %v894
    %v903 = vsel %vm64, %v895, 0.0
    %v904 = vsel %vm64, %v896, 0.0
    %v905 = vadd.f32 %v903, %v904
    %v906 = vsel %vm64, %v897, 0.0
    %v907 = vadd.f32 %v905, %v906
    %v908 = vsel %vm64, %v898, 0.0
    %v909 = vadd.f32 %v907, %v908
    %v910 = vsel %vm64, %v899, 0.0
    %v911 = vadd.f32 %v909, %v910
    %v912 = vsel %vm64, %v900, 0.0
    %v913 = vadd.f32 %v911, %v912
    %v914 = vsel %vm64, %v901, 0.0
    %v915 = vadd.f32 %v913, %v914
    %v916 = vsel %vm64, %v902, 0.0
    %v917 = vadd.f32 %v915, %v916
    %918 = vadd.xlane.f32.xlu0 %v917
    %v919 = vpop.xlane.xlu0 %918
    %vm920 = vcmp.ge.f32.partialorder %v919, 32.0
    %v921 = vsel %vm920, %v877, %v876
    %v922 = vor.u32 %v921, 8192
    %v923 = vxor.u32 %v922, 2147483648
    %vm924 = vcmp.ge.s32.totalorder %v106, %v923
    %vm925 = vcmp.ge.s32.totalorder %v107, %v923
    %vm926 = vcmp.ge.s32.totalorder %v108, %v923
    %vm927 = vcmp.ge.s32.totalorder %v109, %v923
    %vm928 = vcmp.ge.s32.totalorder %v110, %v923
    %vm929 = vcmp.ge.s32.totalorder %v111, %v923
    %vm930 = vcmp.ge.s32.totalorder %v112, %v923
    %vm931 = vcmp.ge.s32.totalorder %v113, %v923
    %v932 = vsel %vm924, 1, 0
    %v933 = vsel %vm925, 1, 0
    %v934 = vsel %vm926, 1, 0
    %v935 = vsel %vm927, 1, 0
    %v936 = vsel %vm928, 1, 0
    %v937 = vsel %vm929, 1, 0
    %v938 = vsel %vm930, 1, 0
    %v939 = vsel %vm931, 1, 0
    %v940 = vcvt.s32.f32 %v932
    %v941 = vcvt.s32.f32 %v933
    %v942 = vcvt.s32.f32 %v934
    %v943 = vcvt.s32.f32 %v935
    %v944 = vcvt.s32.f32 %v936
    %v945 = vcvt.s32.f32 %v937
    %v946 = vcvt.s32.f32 %v938
    %v947 = vcvt.s32.f32 %v939
    %v948 = vsel %vm64, %v940, 0.0
    %v949 = vsel %vm64, %v941, 0.0
    %v950 = vadd.f32 %v948, %v949
    %v951 = vsel %vm64, %v942, 0.0
    %v952 = vadd.f32 %v950, %v951
    %v953 = vsel %vm64, %v943, 0.0
    %v954 = vadd.f32 %v952, %v953
    %v955 = vsel %vm64, %v944, 0.0
    %v956 = vadd.f32 %v954, %v955
    %v957 = vsel %vm64, %v945, 0.0
    %v958 = vadd.f32 %v956, %v957
    %v959 = vsel %vm64, %v946, 0.0
    %v960 = vadd.f32 %v958, %v959
    %v961 = vsel %vm64, %v947, 0.0
    %v962 = vadd.f32 %v960, %v961
    %963 = vadd.xlane.f32.xlu0 %v962
    %v964 = vpop.xlane.xlu0 %963
    %vm965 = vcmp.ge.f32.partialorder %v964, 32.0
    %v966 = vsel %vm965, %v922, %v921
    %v967 = vor.u32 %v966, 4096
    %v968 = vxor.u32 %v967, 2147483648
    %vm969 = vcmp.ge.s32.totalorder %v106, %v968
    %vm970 = vcmp.ge.s32.totalorder %v107, %v968
    %vm971 = vcmp.ge.s32.totalorder %v108, %v968
    %vm972 = vcmp.ge.s32.totalorder %v109, %v968
    %vm973 = vcmp.ge.s32.totalorder %v110, %v968
    %vm974 = vcmp.ge.s32.totalorder %v111, %v968
    %vm975 = vcmp.ge.s32.totalorder %v112, %v968
    %vm976 = vcmp.ge.s32.totalorder %v113, %v968
    %v977 = vsel %vm969, 1, 0
    %v978 = vsel %vm970, 1, 0
    %v979 = vsel %vm971, 1, 0
    %v980 = vsel %vm972, 1, 0
    %v981 = vsel %vm973, 1, 0
    %v982 = vsel %vm974, 1, 0
    %v983 = vsel %vm975, 1, 0
    %v984 = vsel %vm976, 1, 0
    %v985 = vcvt.s32.f32 %v977
    %v986 = vcvt.s32.f32 %v978
    %v987 = vcvt.s32.f32 %v979
    %v988 = vcvt.s32.f32 %v980
    %v989 = vcvt.s32.f32 %v981
    %v990 = vcvt.s32.f32 %v982
    %v991 = vcvt.s32.f32 %v983
    %v992 = vcvt.s32.f32 %v984
    %v993 = vsel %vm64, %v985, 0.0
    %v994 = vsel %vm64, %v986, 0.0
    %v995 = vadd.f32 %v993, %v994
    %v996 = vsel %vm64, %v987, 0.0
    %v997 = vadd.f32 %v995, %v996
    %v998 = vsel %vm64, %v988, 0.0
    %v999 = vadd.f32 %v997, %v998
    %v1000 = vsel %vm64, %v989, 0.0
    %v1001 = vadd.f32 %v999, %v1000
    %v1002 = vsel %vm64, %v990, 0.0
    %v1003 = vadd.f32 %v1001, %v1002
    %v1004 = vsel %vm64, %v991, 0.0
    %v1005 = vadd.f32 %v1003, %v1004
    %v1006 = vsel %vm64, %v992, 0.0
    %v1007 = vadd.f32 %v1005, %v1006
    %1008 = vadd.xlane.f32.xlu0 %v1007
    %v1009 = vpop.xlane.xlu0 %1008
    %vm1010 = vcmp.ge.f32.partialorder %v1009, 32.0
    %v1011 = vsel %vm1010, %v967, %v966
    %v1012 = vor.u32 %v1011, 2048
    %v1013 = vxor.u32 %v1012, 2147483648
    %vm1014 = vcmp.ge.s32.totalorder %v106, %v1013
    %vm1015 = vcmp.ge.s32.totalorder %v107, %v1013
    %vm1016 = vcmp.ge.s32.totalorder %v108, %v1013
    %vm1017 = vcmp.ge.s32.totalorder %v109, %v1013
    %vm1018 = vcmp.ge.s32.totalorder %v110, %v1013
    %vm1019 = vcmp.ge.s32.totalorder %v111, %v1013
    %vm1020 = vcmp.ge.s32.totalorder %v112, %v1013
    %vm1021 = vcmp.ge.s32.totalorder %v113, %v1013
    %v1022 = vsel %vm1014, 1, 0
    %v1023 = vsel %vm1015, 1, 0
    %v1024 = vsel %vm1016, 1, 0
    %v1025 = vsel %vm1017, 1, 0
    %v1026 = vsel %vm1018, 1, 0
    %v1027 = vsel %vm1019, 1, 0
    %v1028 = vsel %vm1020, 1, 0
    %v1029 = vsel %vm1021, 1, 0
    %v1030 = vcvt.s32.f32 %v1022
    %v1031 = vcvt.s32.f32 %v1023
    %v1032 = vcvt.s32.f32 %v1024
    %v1033 = vcvt.s32.f32 %v1025
    %v1034 = vcvt.s32.f32 %v1026
    %v1035 = vcvt.s32.f32 %v1027
    %v1036 = vcvt.s32.f32 %v1028
    %v1037 = vcvt.s32.f32 %v1029
    %v1038 = vsel %vm64, %v1030, 0.0
    %v1039 = vsel %vm64, %v1031, 0.0
    %v1040 = vadd.f32 %v1038, %v1039
    %v1041 = vsel %vm64, %v1032, 0.0
    %v1042 = vadd.f32 %v1040, %v1041
    %v1043 = vsel %vm64, %v1033, 0.0
    %v1044 = vadd.f32 %v1042, %v1043
    %v1045 = vsel %vm64, %v1034, 0.0
    %v1046 = vadd.f32 %v1044, %v1045
    %v1047 = vsel %vm64, %v1035, 0.0
    %v1048 = vadd.f32 %v1046, %v1047
    %v1049 = vsel %vm64, %v1036, 0.0
    %v1050 = vadd.f32 %v1048, %v1049
    %v1051 = vsel %vm64, %v1037, 0.0
    %v1052 = vadd.f32 %v1050, %v1051
    %1053 = vadd.xlane.f32.xlu0 %v1052
    %v1054 = vpop.xlane.xlu0 %1053
    %vm1055 = vcmp.ge.f32.partialorder %v1054, 32.0
    %v1056 = vsel %vm1055, %v1012, %v1011
    %v1057 = vor.u32 %v1056, 1024
    %v1058 = vxor.u32 %v1057, 2147483648
    %vm1059 = vcmp.ge.s32.totalorder %v106, %v1058
    %vm1060 = vcmp.ge.s32.totalorder %v107, %v1058
    %vm1061 = vcmp.ge.s32.totalorder %v108, %v1058
    %vm1062 = vcmp.ge.s32.totalorder %v109, %v1058
    %vm1063 = vcmp.ge.s32.totalorder %v110, %v1058
    %vm1064 = vcmp.ge.s32.totalorder %v111, %v1058
    %vm1065 = vcmp.ge.s32.totalorder %v112, %v1058
    %vm1066 = vcmp.ge.s32.totalorder %v113, %v1058
    %v1067 = vsel %vm1059, 1, 0
    %v1068 = vsel %vm1060, 1, 0
    %v1069 = vsel %vm1061, 1, 0
    %v1070 = vsel %vm1062, 1, 0
    %v1071 = vsel %vm1063, 1, 0
    %v1072 = vsel %vm1064, 1, 0
    %v1073 = vsel %vm1065, 1, 0
    %v1074 = vsel %vm1066, 1, 0
    %v1075 = vcvt.s32.f32 %v1067
    %v1076 = vcvt.s32.f32 %v1068
    %v1077 = vcvt.s32.f32 %v1069
    %v1078 = vcvt.s32.f32 %v1070
    %v1079 = vcvt.s32.f32 %v1071
    %v1080 = vcvt.s32.f32 %v1072
    %v1081 = vcvt.s32.f32 %v1073
    %v1082 = vcvt.s32.f32 %v1074
    %v1083 = vsel %vm64, %v1075, 0.0
    %v1084 = vsel %vm64, %v1076, 0.0
    %v1085 = vadd.f32 %v1083, %v1084
    %v1086 = vsel %vm64, %v1077, 0.0
    %v1087 = vadd.f32 %v1085, %v1086
    %v1088 = vsel %vm64, %v1078, 0.0
    %v1089 = vadd.f32 %v1087, %v1088
    %v1090 = vsel %vm64, %v1079, 0.0
    %v1091 = vadd.f32 %v1089, %v1090
    %v1092 = vsel %vm64, %v1080, 0.0
    %v1093 = vadd.f32 %v1091, %v1092
    %v1094 = vsel %vm64, %v1081, 0.0
    %v1095 = vadd.f32 %v1093, %v1094
    %v1096 = vsel %vm64, %v1082, 0.0
    %v1097 = vadd.f32 %v1095, %v1096
    %1098 = vadd.xlane.f32.xlu0 %v1097
    %v1099 = vpop.xlane.xlu0 %1098
    %vm1100 = vcmp.ge.f32.partialorder %v1099, 32.0
    %v1101 = vsel %vm1100, %v1057, %v1056
    %v1102 = vor.u32 %v1101, 512
    %v1103 = vxor.u32 %v1102, 2147483648
    %vm1104 = vcmp.ge.s32.totalorder %v106, %v1103
    %vm1105 = vcmp.ge.s32.totalorder %v107, %v1103
    %vm1106 = vcmp.ge.s32.totalorder %v108, %v1103
    %vm1107 = vcmp.ge.s32.totalorder %v109, %v1103
    %vm1108 = vcmp.ge.s32.totalorder %v110, %v1103
    %vm1109 = vcmp.ge.s32.totalorder %v111, %v1103
    %vm1110 = vcmp.ge.s32.totalorder %v112, %v1103
    %vm1111 = vcmp.ge.s32.totalorder %v113, %v1103
    %v1112 = vsel %vm1104, 1, 0
    %v1113 = vsel %vm1105, 1, 0
    %v1114 = vsel %vm1106, 1, 0
    %v1115 = vsel %vm1107, 1, 0
    %v1116 = vsel %vm1108, 1, 0
    %v1117 = vsel %vm1109, 1, 0
    %v1118 = vsel %vm1110, 1, 0
    %v1119 = vsel %vm1111, 1, 0
    %v1120 = vcvt.s32.f32 %v1112
    %v1121 = vcvt.s32.f32 %v1113
    %v1122 = vcvt.s32.f32 %v1114
    %v1123 = vcvt.s32.f32 %v1115
    %v1124 = vcvt.s32.f32 %v1116
    %v1125 = vcvt.s32.f32 %v1117
    %v1126 = vcvt.s32.f32 %v1118
    %v1127 = vcvt.s32.f32 %v1119
    %v1128 = vsel %vm64, %v1120, 0.0
    %v1129 = vsel %vm64, %v1121, 0.0
    %v1130 = vadd.f32 %v1128, %v1129
    %v1131 = vsel %vm64, %v1122, 0.0
    %v1132 = vadd.f32 %v1130, %v1131
    %v1133 = vsel %vm64, %v1123, 0.0
    %v1134 = vadd.f32 %v1132, %v1133
    %v1135 = vsel %vm64, %v1124, 0.0
    %v1136 = vadd.f32 %v1134, %v1135
    %v1137 = vsel %vm64, %v1125, 0.0
    %v1138 = vadd.f32 %v1136, %v1137
    %v1139 = vsel %vm64, %v1126, 0.0
    %v1140 = vadd.f32 %v1138, %v1139
    %v1141 = vsel %vm64, %v1127, 0.0
    %v1142 = vadd.f32 %v1140, %v1141
    %1143 = vadd.xlane.f32.xlu0 %v1142
    %v1144 = vpop.xlane.xlu0 %1143
    %vm1145 = vcmp.ge.f32.partialorder %v1144, 32.0
    %v1146 = vsel %vm1145, %v1102, %v1101
    %v1147 = vor.u32 %v1146, 256
    %v1148 = vxor.u32 %v1147, 2147483648
    %vm1149 = vcmp.ge.s32.totalorder %v106, %v1148
    %vm1150 = vcmp.ge.s32.totalorder %v107, %v1148
    %vm1151 = vcmp.ge.s32.totalorder %v108, %v1148
    %vm1152 = vcmp.ge.s32.totalorder %v109, %v1148
    %vm1153 = vcmp.ge.s32.totalorder %v110, %v1148
    %vm1154 = vcmp.ge.s32.totalorder %v111, %v1148
    %vm1155 = vcmp.ge.s32.totalorder %v112, %v1148
    %vm1156 = vcmp.ge.s32.totalorder %v113, %v1148
    %v1157 = vsel %vm1149, 1, 0
    %v1158 = vsel %vm1150, 1, 0
    %v1159 = vsel %vm1151, 1, 0
    %v1160 = vsel %vm1152, 1, 0
    %v1161 = vsel %vm1153, 1, 0
    %v1162 = vsel %vm1154, 1, 0
    %v1163 = vsel %vm1155, 1, 0
    %v1164 = vsel %vm1156, 1, 0
    %v1165 = vcvt.s32.f32 %v1157
    %v1166 = vcvt.s32.f32 %v1158
    %v1167 = vcvt.s32.f32 %v1159
    %v1168 = vcvt.s32.f32 %v1160
    %v1169 = vcvt.s32.f32 %v1161
    %v1170 = vcvt.s32.f32 %v1162
    %v1171 = vcvt.s32.f32 %v1163
    %v1172 = vcvt.s32.f32 %v1164
    %v1173 = vsel %vm64, %v1165, 0.0
    %v1174 = vsel %vm64, %v1166, 0.0
    %v1175 = vadd.f32 %v1173, %v1174
    %v1176 = vsel %vm64, %v1167, 0.0
    %v1177 = vadd.f32 %v1175, %v1176
    %v1178 = vsel %vm64, %v1168, 0.0
    %v1179 = vadd.f32 %v1177, %v1178
    %v1180 = vsel %vm64, %v1169, 0.0
    %v1181 = vadd.f32 %v1179, %v1180
    %v1182 = vsel %vm64, %v1170, 0.0
    %v1183 = vadd.f32 %v1181, %v1182
    %v1184 = vsel %vm64, %v1171, 0.0
    %v1185 = vadd.f32 %v1183, %v1184
    %v1186 = vsel %vm64, %v1172, 0.0
    %v1187 = vadd.f32 %v1185, %v1186
    %1188 = vadd.xlane.f32.xlu0 %v1187
    %v1189 = vpop.xlane.xlu0 %1188
    %vm1190 = vcmp.ge.f32.partialorder %v1189, 32.0
    %v1191 = vsel %vm1190, %v1147, %v1146
    %v1192 = vor.u32 %v1191, 128
    %v1193 = vxor.u32 %v1192, 2147483648
    %vm1194 = vcmp.ge.s32.totalorder %v106, %v1193
    %vm1195 = vcmp.ge.s32.totalorder %v107, %v1193
    %vm1196 = vcmp.ge.s32.totalorder %v108, %v1193
    %vm1197 = vcmp.ge.s32.totalorder %v109, %v1193
    %vm1198 = vcmp.ge.s32.totalorder %v110, %v1193
    %vm1199 = vcmp.ge.s32.totalorder %v111, %v1193
    %vm1200 = vcmp.ge.s32.totalorder %v112, %v1193
    %vm1201 = vcmp.ge.s32.totalorder %v113, %v1193
    %v1202 = vsel %vm1194, 1, 0
    %v1203 = vsel %vm1195, 1, 0
    %v1204 = vsel %vm1196, 1, 0
    %v1205 = vsel %vm1197, 1, 0
    %v1206 = vsel %vm1198, 1, 0
    %v1207 = vsel %vm1199, 1, 0
    %v1208 = vsel %vm1200, 1, 0
    %v1209 = vsel %vm1201, 1, 0
    %v1210 = vcvt.s32.f32 %v1202
    %v1211 = vcvt.s32.f32 %v1203
    %v1212 = vcvt.s32.f32 %v1204
    %v1213 = vcvt.s32.f32 %v1205
    %v1214 = vcvt.s32.f32 %v1206
    %v1215 = vcvt.s32.f32 %v1207
    %v1216 = vcvt.s32.f32 %v1208
    %v1217 = vcvt.s32.f32 %v1209
    %v1218 = vsel %vm64, %v1210, 0.0
    %v1219 = vsel %vm64, %v1211, 0.0
    %v1220 = vadd.f32 %v1218, %v1219
    %v1221 = vsel %vm64, %v1212, 0.0
    %v1222 = vadd.f32 %v1220, %v1221
    %v1223 = vsel %vm64, %v1213, 0.0
    %v1224 = vadd.f32 %v1222, %v1223
    %v1225 = vsel %vm64, %v1214, 0.0
    %v1226 = vadd.f32 %v1224, %v1225
    %v1227 = vsel %vm64, %v1215, 0.0
    %v1228 = vadd.f32 %v1226, %v1227
    %v1229 = vsel %vm64, %v1216, 0.0
    %v1230 = vadd.f32 %v1228, %v1229
    %v1231 = vsel %vm64, %v1217, 0.0
    %v1232 = vadd.f32 %v1230, %v1231
    %1233 = vadd.xlane.f32.xlu0 %v1232
    %v1234 = vpop.xlane.xlu0 %1233
    %vm1235 = vcmp.ge.f32.partialorder %v1234, 32.0
    %v1236 = vsel %vm1235, %v1192, %v1191
    %v1237 = vor.u32 %v1236, 64
    %v1238 = vxor.u32 %v1237, 2147483648
    %vm1239 = vcmp.ge.s32.totalorder %v106, %v1238
    %vm1240 = vcmp.ge.s32.totalorder %v107, %v1238
    %vm1241 = vcmp.ge.s32.totalorder %v108, %v1238
    %vm1242 = vcmp.ge.s32.totalorder %v109, %v1238
    %vm1243 = vcmp.ge.s32.totalorder %v110, %v1238
    %vm1244 = vcmp.ge.s32.totalorder %v111, %v1238
    %vm1245 = vcmp.ge.s32.totalorder %v112, %v1238
    %vm1246 = vcmp.ge.s32.totalorder %v113, %v1238
    %v1247 = vsel %vm1239, 1, 0
    %v1248 = vsel %vm1240, 1, 0
    %v1249 = vsel %vm1241, 1, 0
    %v1250 = vsel %vm1242, 1, 0
    %v1251 = vsel %vm1243, 1, 0
    %v1252 = vsel %vm1244, 1, 0
    %v1253 = vsel %vm1245, 1, 0
    %v1254 = vsel %vm1246, 1, 0
    %v1255 = vcvt.s32.f32 %v1247
    %v1256 = vcvt.s32.f32 %v1248
    %v1257 = vcvt.s32.f32 %v1249
    %v1258 = vcvt.s32.f32 %v1250
    %v1259 = vcvt.s32.f32 %v1251
    %v1260 = vcvt.s32.f32 %v1252
    %v1261 = vcvt.s32.f32 %v1253
    %v1262 = vcvt.s32.f32 %v1254
    %v1263 = vsel %vm64, %v1255, 0.0
    %v1264 = vsel %vm64, %v1256, 0.0
    %v1265 = vadd.f32 %v1263, %v1264
    %v1266 = vsel %vm64, %v1257, 0.0
    %v1267 = vadd.f32 %v1265, %v1266
    %v1268 = vsel %vm64, %v1258, 0.0
    %v1269 = vadd.f32 %v1267, %v1268
    %v1270 = vsel %vm64, %v1259, 0.0
    %v1271 = vadd.f32 %v1269, %v1270
    %v1272 = vsel %vm64, %v1260, 0.0
    %v1273 = vadd.f32 %v1271, %v1272
    %v1274 = vsel %vm64, %v1261, 0.0
    %v1275 = vadd.f32 %v1273, %v1274
    %v1276 = vsel %vm64, %v1262, 0.0
    %v1277 = vadd.f32 %v1275, %v1276
    %1278 = vadd.xlane.f32.xlu0 %v1277
    %v1279 = vpop.xlane.xlu0 %1278
    %vm1280 = vcmp.ge.f32.partialorder %v1279, 32.0
    %v1281 = vsel %vm1280, %v1237, %v1236
    %v1282 = vor.u32 %v1281, 32
    %v1283 = vxor.u32 %v1282, 2147483648
    %vm1284 = vcmp.ge.s32.totalorder %v106, %v1283
    %vm1285 = vcmp.ge.s32.totalorder %v107, %v1283
    %vm1286 = vcmp.ge.s32.totalorder %v108, %v1283
    %vm1287 = vcmp.ge.s32.totalorder %v109, %v1283
    %vm1288 = vcmp.ge.s32.totalorder %v110, %v1283
    %vm1289 = vcmp.ge.s32.totalorder %v111, %v1283
    %vm1290 = vcmp.ge.s32.totalorder %v112, %v1283
    %vm1291 = vcmp.ge.s32.totalorder %v113, %v1283
    %v1292 = vsel %vm1284, 1, 0
    %v1293 = vsel %vm1285, 1, 0
    %v1294 = vsel %vm1286, 1, 0
    %v1295 = vsel %vm1287, 1, 0
    %v1296 = vsel %vm1288, 1, 0
    %v1297 = vsel %vm1289, 1, 0
    %v1298 = vsel %vm1290, 1, 0
    %v1299 = vsel %vm1291, 1, 0
    %v1300 = vcvt.s32.f32 %v1292
    %v1301 = vcvt.s32.f32 %v1293
    %v1302 = vcvt.s32.f32 %v1294
    %v1303 = vcvt.s32.f32 %v1295
    %v1304 = vcvt.s32.f32 %v1296
    %v1305 = vcvt.s32.f32 %v1297
    %v1306 = vcvt.s32.f32 %v1298
    %v1307 = vcvt.s32.f32 %v1299
    %v1308 = vsel %vm64, %v1300, 0.0
    %v1309 = vsel %vm64, %v1301, 0.0
    %v1310 = vadd.f32 %v1308, %v1309
    %v1311 = vsel %vm64, %v1302, 0.0
    %v1312 = vadd.f32 %v1310, %v1311
    %v1313 = vsel %vm64, %v1303, 0.0
    %v1314 = vadd.f32 %v1312, %v1313
    %v1315 = vsel %vm64, %v1304, 0.0
    %v1316 = vadd.f32 %v1314, %v1315
    %v1317 = vsel %vm64, %v1305, 0.0
    %v1318 = vadd.f32 %v1316, %v1317
    %v1319 = vsel %vm64, %v1306, 0.0
    %v1320 = vadd.f32 %v1318, %v1319
    %v1321 = vsel %vm64, %v1307, 0.0
    %v1322 = vadd.f32 %v1320, %v1321
    %1323 = vadd.xlane.f32.xlu0 %v1322
    %v1324 = vpop.xlane.xlu0 %1323
    %vm1325 = vcmp.ge.f32.partialorder %v1324, 32.0
    %v1326 = vsel %vm1325, %v1282, %v1281
    %v1327 = vor.u32 %v1326, 16
    %v1328 = vxor.u32 %v1327, 2147483648
    %vm1329 = vcmp.ge.s32.totalorder %v106, %v1328
    %vm1330 = vcmp.ge.s32.totalorder %v107, %v1328
    %vm1331 = vcmp.ge.s32.totalorder %v108, %v1328
    %vm1332 = vcmp.ge.s32.totalorder %v109, %v1328
    %vm1333 = vcmp.ge.s32.totalorder %v110, %v1328
    %vm1334 = vcmp.ge.s32.totalorder %v111, %v1328
    %vm1335 = vcmp.ge.s32.totalorder %v112, %v1328
    %vm1336 = vcmp.ge.s32.totalorder %v113, %v1328
    %v1337 = vsel %vm1329, 1, 0
    %v1338 = vsel %vm1330, 1, 0
    %v1339 = vsel %vm1331, 1, 0
    %v1340 = vsel %vm1332, 1, 0
    %v1341 = vsel %vm1333, 1, 0
    %v1342 = vsel %vm1334, 1, 0
    %v1343 = vsel %vm1335, 1, 0
    %v1344 = vsel %vm1336, 1, 0
    %v1345 = vcvt.s32.f32 %v1337
    %v1346 = vcvt.s32.f32 %v1338
    %v1347 = vcvt.s32.f32 %v1339
    %v1348 = vcvt.s32.f32 %v1340
    %v1349 = vcvt.s32.f32 %v1341
    %v1350 = vcvt.s32.f32 %v1342
    %v1351 = vcvt.s32.f32 %v1343
    %v1352 = vcvt.s32.f32 %v1344
    %v1353 = vsel %vm64, %v1345, 0.0
    %v1354 = vsel %vm64, %v1346, 0.0
    %v1355 = vadd.f32 %v1353, %v1354
    %v1356 = vsel %vm64, %v1347, 0.0
    %v1357 = vadd.f32 %v1355, %v1356
    %v1358 = vsel %vm64, %v1348, 0.0
    %v1359 = vadd.f32 %v1357, %v1358
    %v1360 = vsel %vm64, %v1349, 0.0
    %v1361 = vadd.f32 %v1359, %v1360
    %v1362 = vsel %vm64, %v1350, 0.0
    %v1363 = vadd.f32 %v1361, %v1362
    %v1364 = vsel %vm64, %v1351, 0.0
    %v1365 = vadd.f32 %v1363, %v1364
    %v1366 = vsel %vm64, %v1352, 0.0
    %v1367 = vadd.f32 %v1365, %v1366
    %1368 = vadd.xlane.f32.xlu0 %v1367
    %v1369 = vpop.xlane.xlu0 %1368
    %vm1370 = vcmp.ge.f32.partialorder %v1369, 32.0
    %v1371 = vsel %vm1370, %v1327, %v1326
    %v1372 = vor.u32 %v1371, 8
    %v1373 = vxor.u32 %v1372, 2147483648
    %vm1374 = vcmp.ge.s32.totalorder %v106, %v1373
    %vm1375 = vcmp.ge.s32.totalorder %v107, %v1373
    %vm1376 = vcmp.ge.s32.totalorder %v108, %v1373
    %vm1377 = vcmp.ge.s32.totalorder %v109, %v1373
    %vm1378 = vcmp.ge.s32.totalorder %v110, %v1373
    %vm1379 = vcmp.ge.s32.totalorder %v111, %v1373
    %vm1380 = vcmp.ge.s32.totalorder %v112, %v1373
    %vm1381 = vcmp.ge.s32.totalorder %v113, %v1373
    %v1382 = vsel %vm1374, 1, 0
    %v1383 = vsel %vm1375, 1, 0
    %v1384 = vsel %vm1376, 1, 0
    %v1385 = vsel %vm1377, 1, 0
    %v1386 = vsel %vm1378, 1, 0
    %v1387 = vsel %vm1379, 1, 0
    %v1388 = vsel %vm1380, 1, 0
    %v1389 = vsel %vm1381, 1, 0
    %v1390 = vcvt.s32.f32 %v1382
    %v1391 = vcvt.s32.f32 %v1383
    %v1392 = vcvt.s32.f32 %v1384
    %v1393 = vcvt.s32.f32 %v1385
    %v1394 = vcvt.s32.f32 %v1386
    %v1395 = vcvt.s32.f32 %v1387
    %v1396 = vcvt.s32.f32 %v1388
    %v1397 = vcvt.s32.f32 %v1389
    %v1398 = vsel %vm64, %v1390, 0.0
    %v1399 = vsel %vm64, %v1391, 0.0
    %v1400 = vadd.f32 %v1398, %v1399
    %v1401 = vsel %vm64, %v1392, 0.0
    %v1402 = vadd.f32 %v1400, %v1401
    %v1403 = vsel %vm64, %v1393, 0.0
    %v1404 = vadd.f32 %v1402, %v1403
    %v1405 = vsel %vm64, %v1394, 0.0
    %v1406 = vadd.f32 %v1404, %v1405
    %v1407 = vsel %vm64, %v1395, 0.0
    %v1408 = vadd.f32 %v1406, %v1407
    %v1409 = vsel %vm64, %v1396, 0.0
    %v1410 = vadd.f32 %v1408, %v1409
    %v1411 = vsel %vm64, %v1397, 0.0
    %v1412 = vadd.f32 %v1410, %v1411
    %1413 = vadd.xlane.f32.xlu0 %v1412
    %v1414 = vpop.xlane.xlu0 %1413
    %vm1415 = vcmp.ge.f32.partialorder %v1414, 32.0
    %v1416 = vsel %vm1415, %v1372, %v1371
    %v1417 = vor.u32 %v1416, 4
    %v1418 = vxor.u32 %v1417, 2147483648
    %vm1419 = vcmp.ge.s32.totalorder %v106, %v1418
    %vm1420 = vcmp.ge.s32.totalorder %v107, %v1418
    %vm1421 = vcmp.ge.s32.totalorder %v108, %v1418
    %vm1422 = vcmp.ge.s32.totalorder %v109, %v1418
    %vm1423 = vcmp.ge.s32.totalorder %v110, %v1418
    %vm1424 = vcmp.ge.s32.totalorder %v111, %v1418
    %vm1425 = vcmp.ge.s32.totalorder %v112, %v1418
    %vm1426 = vcmp.ge.s32.totalorder %v113, %v1418
    %v1427 = vsel %vm1419, 1, 0
    %v1428 = vsel %vm1420, 1, 0
    %v1429 = vsel %vm1421, 1, 0
    %v1430 = vsel %vm1422, 1, 0
    %v1431 = vsel %vm1423, 1, 0
    %v1432 = vsel %vm1424, 1, 0
    %v1433 = vsel %vm1425, 1, 0
    %v1434 = vsel %vm1426, 1, 0
    %v1435 = vcvt.s32.f32 %v1427
    %v1436 = vcvt.s32.f32 %v1428
    %v1437 = vcvt.s32.f32 %v1429
    %v1438 = vcvt.s32.f32 %v1430
    %v1439 = vcvt.s32.f32 %v1431
    %v1440 = vcvt.s32.f32 %v1432
    %v1441 = vcvt.s32.f32 %v1433
    %v1442 = vcvt.s32.f32 %v1434
    %v1443 = vsel %vm64, %v1435, 0.0
    %v1444 = vsel %vm64, %v1436, 0.0
    %v1445 = vadd.f32 %v1443, %v1444
    %v1446 = vsel %vm64, %v1437, 0.0
    %v1447 = vadd.f32 %v1445, %v1446
    %v1448 = vsel %vm64, %v1438, 0.0
    %v1449 = vadd.f32 %v1447, %v1448
    %v1450 = vsel %vm64, %v1439, 0.0
    %v1451 = vadd.f32 %v1449, %v1450
    %v1452 = vsel %vm64, %v1440, 0.0
    %v1453 = vadd.f32 %v1451, %v1452
    %v1454 = vsel %vm64, %v1441, 0.0
    %v1455 = vadd.f32 %v1453, %v1454
    %v1456 = vsel %vm64, %v1442, 0.0
    %v1457 = vadd.f32 %v1455, %v1456
    %1458 = vadd.xlane.f32.xlu0 %v1457
    %v1459 = vpop.xlane.xlu0 %1458
    %vm1460 = vcmp.ge.f32.partialorder %v1459, 32.0
    %v1461 = vsel %vm1460, %v1417, %v1416
    %v1462 = vor.u32 %v1461, 2
    %v1463 = vxor.u32 %v1462, 2147483648
    %vm1464 = vcmp.ge.s32.totalorder %v106, %v1463
    %vm1465 = vcmp.ge.s32.totalorder %v107, %v1463
    %vm1466 = vcmp.ge.s32.totalorder %v108, %v1463
    %vm1467 = vcmp.ge.s32.totalorder %v109, %v1463
    %vm1468 = vcmp.ge.s32.totalorder %v110, %v1463
    %vm1469 = vcmp.ge.s32.totalorder %v111, %v1463
    %vm1470 = vcmp.ge.s32.totalorder %v112, %v1463
    %vm1471 = vcmp.ge.s32.totalorder %v113, %v1463
    %v1472 = vsel %vm1464, 1, 0
    %v1473 = vsel %vm1465, 1, 0
    %v1474 = vsel %vm1466, 1, 0
    %v1475 = vsel %vm1467, 1, 0
    %v1476 = vsel %vm1468, 1, 0
    %v1477 = vsel %vm1469, 1, 0
    %v1478 = vsel %vm1470, 1, 0
    %v1479 = vsel %vm1471, 1, 0
    %v1480 = vcvt.s32.f32 %v1472
    %v1481 = vcvt.s32.f32 %v1473
    %v1482 = vcvt.s32.f32 %v1474
    %v1483 = vcvt.s32.f32 %v1475
    %v1484 = vcvt.s32.f32 %v1476
    %v1485 = vcvt.s32.f32 %v1477
    %v1486 = vcvt.s32.f32 %v1478
    %v1487 = vcvt.s32.f32 %v1479
    %v1488 = vsel %vm64, %v1480, 0.0
    %v1489 = vsel %vm64, %v1481, 0.0
    %v1490 = vadd.f32 %v1488, %v1489
    %v1491 = vsel %vm64, %v1482, 0.0
    %v1492 = vadd.f32 %v1490, %v1491
    %v1493 = vsel %vm64, %v1483, 0.0
    %v1494 = vadd.f32 %v1492, %v1493
    %v1495 = vsel %vm64, %v1484, 0.0
    %v1496 = vadd.f32 %v1494, %v1495
    %v1497 = vsel %vm64, %v1485, 0.0
    %v1498 = vadd.f32 %v1496, %v1497
    %v1499 = vsel %vm64, %v1486, 0.0
    %v1500 = vadd.f32 %v1498, %v1499
    %v1501 = vsel %vm64, %v1487, 0.0
    %v1502 = vadd.f32 %v1500, %v1501
    %1503 = vadd.xlane.f32.xlu0 %v1502
    %v1504 = vpop.xlane.xlu0 %1503
    %vm1505 = vcmp.ge.f32.partialorder %v1504, 32.0
    %v1506 = vsel %vm1505, %v1462, %v1461
    %v1507 = vor.u32 %v1506, 1
    %v1508 = vxor.u32 %v1507, 2147483648
    %vm1509 = vcmp.ge.s32.totalorder %v106, %v1508
    %vm1510 = vcmp.ge.s32.totalorder %v107, %v1508
    %vm1511 = vcmp.ge.s32.totalorder %v108, %v1508
    %vm1512 = vcmp.ge.s32.totalorder %v109, %v1508
    %vm1513 = vcmp.ge.s32.totalorder %v110, %v1508
    %vm1514 = vcmp.ge.s32.totalorder %v111, %v1508
    %vm1515 = vcmp.ge.s32.totalorder %v112, %v1508
    %vm1516 = vcmp.ge.s32.totalorder %v113, %v1508
    %v1517 = vsel %vm1509, 1, 0
    %v1518 = vsel %vm1510, 1, 0
    %v1519 = vsel %vm1511, 1, 0
    %v1520 = vsel %vm1512, 1, 0
    %v1521 = vsel %vm1513, 1, 0
    %v1522 = vsel %vm1514, 1, 0
    %v1523 = vsel %vm1515, 1, 0
    %v1524 = vsel %vm1516, 1, 0
    %v1525 = vcvt.s32.f32 %v1517
    %v1526 = vcvt.s32.f32 %v1518
    %v1527 = vcvt.s32.f32 %v1519
    %v1528 = vcvt.s32.f32 %v1520
    %v1529 = vcvt.s32.f32 %v1521
    %v1530 = vcvt.s32.f32 %v1522
    %v1531 = vcvt.s32.f32 %v1523
    %v1532 = vcvt.s32.f32 %v1524
    %v1533 = vsel %vm64, %v1525, 0.0
    %v1534 = vsel %vm64, %v1526, 0.0
    %v1535 = vadd.f32 %v1533, %v1534
    %v1536 = vsel %vm64, %v1527, 0.0
    %v1537 = vadd.f32 %v1535, %v1536
    %v1538 = vsel %vm64, %v1528, 0.0
    %v1539 = vadd.f32 %v1537, %v1538
    %v1540 = vsel %vm64, %v1529, 0.0
    %v1541 = vadd.f32 %v1539, %v1540
    %v1542 = vsel %vm64, %v1530, 0.0
    %v1543 = vadd.f32 %v1541, %v1542
    %v1544 = vsel %vm64, %v1531, 0.0
    %v1545 = vadd.f32 %v1543, %v1544
    %v1546 = vsel %vm64, %v1532, 0.0
    %v1547 = vadd.f32 %v1545, %v1546
    %1548 = vadd.xlane.f32.xlu0 %v1547
    %v1549 = vpop.xlane.xlu0 %1548
    %vm1550 = vcmp.ge.f32.partialorder %v1549, 32.0
    %v1551 = vsel %vm1550, %v1507, %v1506
    %v1552 = vxor.u32 %v1551, 2147483648
    %vm1553 = vcmp.ge.s32.totalorder %v106, %v1552
    %vm1554 = vcmp.ge.s32.totalorder %v107, %v1552
    %vm1555 = vcmp.ge.s32.totalorder %v108, %v1552
    %vm1556 = vcmp.ge.s32.totalorder %v109, %v1552
    %vm1557 = vcmp.ge.s32.totalorder %v110, %v1552
    %vm1558 = vcmp.ge.s32.totalorder %v111, %v1552
    %vm1559 = vcmp.ge.s32.totalorder %v112, %v1552
    %vm1560 = vcmp.ge.s32.totalorder %v113, %v1552
    %1563 = vst [vmem:[#allocation1] ss:$4 sm:$0xff] %v43
    %s1564 = scalar_lea.vmem [#allocation1], 32
    %1565 = vst [vmem:[%s1564] ss:$4 sm:$0xff] %v44
    %v1566 = vld.sshfl [vmem:[#allocation1] sm:$0xff pattern:$0x73625140]
    %v1567 = vld.sshfl [vmem:[#allocation1 + $0x8] sm:$0xff pattern:$0x73625140]
    %v1568 = vld.sshfl [vmem:[#allocation1 + $0x10] sm:$0xff pattern:$0x73625140]
    %v1569 = vld.sshfl [vmem:[#allocation1 + $0x18] sm:$0xff pattern:$0x73625140]
    %v1570 = vld.sshfl [vmem:[#allocation1 + $0x20] sm:$0xff pattern:$0x73625140]
    %v1571 = vld.sshfl [vmem:[#allocation1 + $0x28] sm:$0xff pattern:$0x73625140]
    %v1572 = vld.sshfl [vmem:[#allocation1 + $0x30] sm:$0xff pattern:$0x73625140]
    %v1573 = vld.sshfl [vmem:[#allocation1 + $0x38] sm:$0xff pattern:$0x73625140]
    %v1582 = vsel %vm1553, %v1566, 0.0
    %v1583 = vsel %vm1554, %v1567, 0.0
    %v1584 = vsel %vm1555, %v1568, 0.0
    %v1585 = vsel %vm1556, %v1569, 0.0
    %v1586 = vsel %vm1557, %v1570, 0.0
    %v1587 = vsel %vm1558, %v1571, 0.0
    %v1588 = vsel %vm1559, %v1572, 0.0
    %v1589 = vsel %vm1560, %v1573, 0.0
    %v1598 = vrot.slane %v1583, 6
    %v1599 = vrot.slane %v1584, 4
    %v1600 = vrot.slane %v1585, 2
    %v1601 = vrot.slane %v1587, 6
    %v1602 = vrot.slane %v1588, 4
    %v1603 = vrot.slane %v1589, 2
    %v1604 = vsel %vm64, %v1582, %v1598
    %v1605 = vsel %vm66, %v1599, %v1600
    %v1606 = vsel %vm68, %v1604, %v1605
    %v1607 = vsel %vm64, %v1586, %v1601
    %v1608 = vsel %vm66, %v1602, %v1603
    %v1609 = vsel %vm68, %v1607, %v1608
    %1612 = vst [vmem:[#allocation7] sm:$0xff] %v1606
    %1613 = vst [vmem:[#allocation7 + $0x8] sm:$0xff] %v1609
    %vm1614 = vcmp.gt.f32.partialorder %v1582, 0.0
    %vm1615 = vcmp.gt.f32.partialorder %v1583, 0.0
    %vm1616 = vcmp.gt.f32.partialorder %v1584, 0.0
    %vm1617 = vcmp.gt.f32.partialorder %v1585, 0.0
    %vm1618 = vcmp.gt.f32.partialorder %v1586, 0.0
    %vm1619 = vcmp.gt.f32.partialorder %v1587, 0.0
    %vm1620 = vcmp.gt.f32.partialorder %v1588, 0.0
    %vm1621 = vcmp.gt.f32.partialorder %v1589, 0.0
    %v1622 = vsel %vm1614, 1.0, 0.0
    %v1623 = vsel %vm1615, 1.0, 0.0
    %v1624 = vsel %vm1616, 1.0, 0.0
    %v1625 = vsel %vm1617, 1.0, 0.0
    %v1626 = vsel %vm1618, 1.0, 0.0
    %v1627 = vsel %vm1619, 1.0, 0.0
    %v1628 = vsel %vm1620, 1.0, 0.0
    %v1629 = vsel %vm1621, 1.0, 0.0
    %v1630 = vsel %vm64, %v1622, 0.0
    %v1631 = vrot.slane %v1630, 4
    %v1632 = vadd.f32 %v1630, %v1631
    %v1633 = vrot.slane %v1632, 2
    %v1634 = vadd.f32 %v1632, %v1633
    %v1635 = vrot.slane %v1634, 1
    %v1636 = vadd.f32 %v1634, %v1635
    %v1637 = vsel %vm64, %v1623, 0.0
    %v1638 = vrot.slane %v1637, 4
    %v1639 = vadd.f32 %v1637, %v1638
    %v1640 = vrot.slane %v1639, 2
    %v1641 = vadd.f32 %v1639, %v1640
    %v1642 = vrot.slane %v1641, 1
    %v1643 = vadd.f32 %v1641, %v1642
    %v1644 = vsel %vm64, %v1624, 0.0
    %v1645 = vrot.slane %v1644, 4
    %v1646 = vadd.f32 %v1644, %v1645
    %v1647 = vrot.slane %v1646, 2
    %v1648 = vadd.f32 %v1646, %v1647
    %v1649 = vrot.slane %v1648, 1
    %v1650 = vadd.f32 %v1648, %v1649
    %v1651 = vsel %vm64, %v1625, 0.0
    %v1652 = vrot.slane %v1651, 4
    %v1653 = vadd.f32 %v1651, %v1652
    %v1654 = vrot.slane %v1653, 2
    %v1655 = vadd.f32 %v1653, %v1654
    %v1656 = vrot.slane %v1655, 1
    %v1657 = vadd.f32 %v1655, %v1656
    %v1658 = vsel %vm64, %v1626, 0.0
    %v1659 = vrot.slane %v1658, 4
    %v1660 = vadd.f32 %v1658, %v1659
    %v1661 = vrot.slane %v1660, 2
    %v1662 = vadd.f32 %v1660, %v1661
    %v1663 = vrot.slane %v1662, 1
    %v1664 = vadd.f32 %v1662, %v1663
    %v1665 = vsel %vm64, %v1627, 0.0
    %v1666 = vrot.slane %v1665, 4
    %v1667 = vadd.f32 %v1665, %v1666
    %v1668 = vrot.slane %v1667, 2
    %v1669 = vadd.f32 %v1667, %v1668
    %v1670 = vrot.slane %v1669, 1
    %v1671 = vadd.f32 %v1669, %v1670
    %v1672 = vsel %vm64, %v1628, 0.0
    %v1673 = vrot.slane %v1672, 4
    %v1674 = vadd.f32 %v1672, %v1673
    %v1675 = vrot.slane %v1674, 2
    %v1676 = vadd.f32 %v1674, %v1675
    %v1677 = vrot.slane %v1676, 1
    %v1678 = vadd.f32 %v1676, %v1677
    %v1679 = vsel %vm64, %v1629, 0.0
    %v1680 = vrot.slane %v1679, 4
    %v1681 = vadd.f32 %v1679, %v1680
    %v1682 = vrot.slane %v1681, 2
    %v1683 = vadd.f32 %v1681, %v1682
    %v1684 = vrot.slane %v1683, 1
    %v1685 = vadd.f32 %v1683, %v1684
    %v1686 = vlaneseq
    %v1687 = vshrl.u32 %v1686, 7
    %vm1688 = vcmp.eq.s32.totalorder %v1687, 0
    %v1689 = vsel %vm1688, %v1636, 0.0
    %v1690 = vsel %vm1688, %v1643, 0.0
    %v1691 = vsel %vm1688, %v1650, 0.0
    %v1692 = vsel %vm1688, %v1657, 0.0
    %v1693 = vsel %vm1688, %v1664, 0.0
    %v1694 = vsel %vm1688, %v1671, 0.0
    %v1695 = vsel %vm1688, %v1678, 0.0
    %v1696 = vsel %vm1688, %v1685, 0.0
    %1697 = vst [vmem:[#allocation8] sm:$0xff] %v1689
    %1698 = vst [vmem:[#allocation8 + $0x8] sm:$0xff] %v1690
    %1699 = vst [vmem:[#allocation8 + $0x10] sm:$0xff] %v1691
    %1700 = vst [vmem:[#allocation8 + $0x18] sm:$0xff] %v1692
    %1701 = vst [vmem:[#allocation8 + $0x20] sm:$0xff] %v1693
    %1702 = vst [vmem:[#allocation8 + $0x28] sm:$0xff] %v1694
    %1703 = vst [vmem:[#allocation8 + $0x30] sm:$0xff] %v1695
    %1704 = vst [vmem:[#allocation8 + $0x38] sm:$0xff] %v1696
    // Predicated region
    $region18: #{tpu_custom_call.1} parent=1 // pred_check
      _
    $region19: #{tpu_custom_call.1} parent=1 // pred_check_branch
      %1706 = sbr.rel (0) target = $region21
    $region20: #{tpu_custom_call.1} parent=1 // pred_region
      %1708 = vsyncadd [#allocation4], 0
      %s1710 = sshll.u32 [#allocation7], 4
      %s1711 = int_to_ptr.vmem [resolvable:$true] %s1710
      %s1712 = sshll.u32 %s2, 4
      %s1713 = int_to_ptr.hbm [resolvable:$true] %s1712
      %1715 = dma.vmem_to_hbm [thread:$0]  %s1711, 256, %s1713, [#allocation4]
    $region21: #{tpu_custom_call.1} parent=1 // pred_fallthru
      _
    // Predicated region
    $region22: #{tpu_custom_call.1} parent=1 // pred_check
      _
    $region23: #{tpu_custom_call.1} parent=1 // pred_check_branch
      %1717 = sbr.rel (0) target = $region25
    $region24: #{tpu_custom_call.1} parent=1 // pred_region
      %1719 = vsyncadd [#allocation9], 0
      %s1721 = sshll.u32 [#allocation8], 4
      %s1722 = int_to_ptr.vmem [resolvable:$true] %s1721
      %s1723 = sshll.u32 %s3, 4
      %s1724 = int_to_ptr.hbm [resolvable:$true] %s1723
      %1726 = dma.vmem_to_hbm [thread:$0]  %s1722, 1024, %s1724, [#allocation9]
    $region25: #{tpu_custom_call.1} parent=1 // pred_fallthru
      _
    // Predicated region
    $region26: #{tpu_custom_call.1} parent=1 // pred_check
      _
    $region27: #{tpu_custom_call.1} parent=1 // pred_check_branch
      %1728 = sbr.rel (0) target = $region29
    $region28: #{tpu_custom_call.1} parent=1 // pred_region
      %1730 = dma.done [#allocation4], 256
    $region29: #{tpu_custom_call.1} parent=1 // pred_fallthru
      _
    // Predicated region
    $region30: #{tpu_custom_call.1} parent=1 // pred_check
      _
    $region31: #{tpu_custom_call.1} parent=1 // pred_check_branch
      %1732 = sbr.rel (0) target = $region33
    $region32: #{tpu_custom_call.1} parent=1 // pred_region
      %1734 = dma.done [#allocation9], 1024
    $region33: #{tpu_custom_call.1} parent=1 // pred_fallthru
      _
    %1735 = vsyncpa [#allocation3], 1
    %1736 = vsyncpa [#allocation6], 1
    %1737 = vsyncpa [#allocation4], 1
    %1738 = vsyncpa [#allocation9], 1

</llo_original>
